<compile_context>
chip_gen: v7x
topology: tpu7x:2x2x1
jax: 0.10.0
libtpu: 0.0.40
codegen_flags: <defaults>
</compile_context>

<pallas_src>
import math
import numpy as np
import jax
import jax.numpy as jnp
from jax.experimental import pallas as pl
from jax.experimental.pallas import tpu as pltpu

# ----- ExtinctionModule / ScaleFluxModule configuration ----------------------
WAVELENGTH_MIN = 0.3
WAVELENGTH_MAX = 50.0
LOG_WL_MIN = math.log10(WAVELENGTH_MIN)
LOG_WL_MAX = math.log10(WAVELENGTH_MAX)
AV_MIN = 0.0
AV_MAX = 10.0
NUM_AV = 128            # module default 10000; small synthetic grid here
NUM_WL = 256            # module default 10000; small synthetic grid here
TRANSITION_WIDTH = 0.02
A_REF_CCM89 = 3.55
A_REF_MCCLURE = 7.75
REF_DIST = 1.0
LN10 = math.log(10.0)

TB = 8                  # batch rows per grid step (multiple of 8)


def build_extinction_law():
    """Deterministic synthetic stand-in for _compute_extinction_law_grid()."""
    wl_log = np.linspace(LOG_WL_MIN, LOG_WL_MAX, NUM_WL)
    wl = 10.0 ** wl_log
    # TODO(synk): the real module spline-interpolates CCM89/McClure curves loaded
    # from disk; deterministic analytic stand-ins of the same shape are used here.
    ext_ccm89 = 1.2 / (wl + 0.1) + 0.05 * np.sin(3.0 * wl_log)
    ext_mcc_lo = 1.0 / (wl + 0.2) + 0.03 * np.cos(2.0 * wl_log)
    ext_mcc_hi = 0.9 / (wl + 0.3) + 0.02 * np.sin(5.0 * wl_log)

    av = np.linspace(AV_MIN, AV_MAX, NUM_AV)[:, None]
    h = TRANSITION_WIDTH / 2.0
    law = np.ones((NUM_AV, NUM_WL))

    c1 = av <= 3.0 - h
    c2 = (av > 3.0 - h) & (av <= 3.0 + h)
    c3 = (av > 3.0 + h) & (av <= 8.0 - h)
    c4 = (av > 8.0 - h) & (av <= 8.0 + h)
    c5 = av > 8.0 + h

    law = np.where(c1, ext_ccm89[None, :] / A_REF_CCM89, law)
    w2 = (av - 3.0 + h) / TRANSITION_WIDTH
    law = np.where(c2,
                   ext_ccm89[None, :] * (1.0 - w2) / A_REF_CCM89
                   + ext_mcc_lo[None, :] * w2 / A_REF_MCCLURE,
                   law)
    law = np.where(c3, ext_mcc_lo[None, :] / A_REF_MCCLURE, law)
    w4 = (av - 8.0 + h) / TRANSITION_WIDTH
    law = np.where(c4,
                   ext_mcc_lo[None, :] * (1.0 - w4) / A_REF_MCCLURE
                   + ext_mcc_hi[None, :] * w4 / A_REF_MCCLURE,
                   law)
    law = np.where(c5, ext_mcc_hi[None, :] / A_REF_MCCLURE, law)
    return law.astype(np.float32)


# ----- Pallas kernel ----------------------------------------------------------
def _ext_scale_kernel(x_ref, y_ref, law_ref, dist_ref, av_smem_ref,
                      o_ref, ix_ref, exps_ref):
    tb, n_wave = x_ref.shape
    b0 = pl.program_id(0) * tb

    # --- batched column coordinate for the whole (TB, n_wave) tile ----------
    # grid_sample(align_corners=False, padding_mode='border'): pre-clipping the
    # coordinate is equivalent to clamping the gather indices.
    x = x_ref[...]
    wl_norm = (2.0 * (jnp.log10(x) - LOG_WL_MIN)
               / (LOG_WL_MAX - LOG_WL_MIN) - 1.0)
    ix = jnp.clip(((wl_norm + 1.0) * NUM_WL - 1.0) * 0.5, 0.0, NUM_WL - 1.0)
    ix_ref[...] = ix

    # Hoisted float column iota (loop-invariant; JAX does not CSE broadcasts).
    c_f = jax.lax.broadcasted_iota(jnp.int32, (NUM_WL, n_wave), 0).astype(
        jnp.float32)

    @pl.loop(0, tb)
    def _(r):
        # --- Av (table-row) coordinate (scalar path, SMEM) -------------------
        av_s = av_smem_ref[b0 + r]                          # f32 scalar
        av_norm = 2.0 * (av_s - AV_MIN) / (AV_MAX - AV_MIN) - 1.0
        iy = jnp.clip(((av_norm + 1.0) * NUM_AV - 1.0) * 0.5, 0.0, NUM_AV - 1.0)
        iy0f = jnp.floor(iy)
        ty = iy - iy0f
        iy0 = iy0f.astype(jnp.int32)
        iy1 = jnp.minimum(iy0 + 1, NUM_AV - 1)

        # Exact f32 2-row lerp of the law table, with the per-row exponent
        # scale -0.4*ln(10)*Av folded into the lerp coefficients.
        scale = -0.4 * LN10 * av_s
        a = scale * (1.0 - ty)
        b = scale * ty
        row0 = law_ref[pl.ds(iy0, 1), :]                    # (1, NUM_WL)
        row1 = law_ref[pl.ds(iy1, 1), :]
        rowmix = row0 * a + row1 * b                        # (1, NUM_WL) f32

        # --- wavelength (table-column) bilinear weights for this row --------
        # Hat weights w[c,j] = relu(1 - |c - ix[j]|): exactly (1-tx) at ix0 and
        # tx at ix0+1, 0 elsewhere.  4 VPU ops per selector vreg, no int math.
        ix_r = ix_ref[pl.ds(r, 1), :]                       # (1, n_wave)
        w_col = jnp.maximum(1.0 - jnp.abs(c_f - ix_r), 0.0)  # (NUM_WL, n_wave)

        # Single tiny selector matmul (full precision: 10**(0.4*A*Av) amplifies
        # single-pass bf16 truncation beyond module fidelity).
        s_r = jnp.dot(rowmix, w_col, preferred_element_type=jnp.float32,
                      precision=jax.lax.Precision.HIGHEST)  # (1, n_wave)
        exps_ref[pl.ds(r, 1), :] = s_r                      # -0.4*ln10*A*Av

    # --- batched elementwise finalize over the whole (TB, n_wave) tile -------
    y = y_ref[...]
    ext_inv = jnp.exp(exps_ref[...])                        # 10**(-0.4*A*Av), EUP
    y_corr = jnp.where(x < 40.0, y * ext_inv, y)
    rdist = REF_DIST / dist_ref[...]                        # (TB, 1)
    o_ref[...] = y_corr * (rdist * rdist)


@jax.jit
def extinction_scaling_forward(y, x, theta, law):
    B, n_wave = y.shape
    dist = theta[:, -2:-1].astype(jnp.float32)              # (B, 1)
    av = theta[:, -1:].astype(jnp.float32)                  # (B, 1)
    x = x.astype(jnp.float32)
    y = y.astype(jnp.float32)

    # Pad batch to a multiple of TB (pad rows are benign: x=1, dist=1, av=0).
    Bp = ((B + TB - 1) // TB) * TB
    pad = Bp - B
    if pad:
        x = jnp.pad(x, ((0, pad), (0, 0)), constant_values=1.0)
        y = jnp.pad(y, ((0, pad), (0, 0)))
        av = jnp.pad(av, ((0, pad), (0, 0)))
        dist = jnp.pad(dist, ((0, pad), (0, 0)), constant_values=1.0)

    av_flat = av[:, 0]                                      # (Bp,) f32, SMEM

    out = pl.pallas_call(
        _ext_scale_kernel,
        out_shape=jax.ShapeDtypeStruct((Bp, n_wave), jnp.float32),
        grid=(Bp // TB,),
        in_specs=[
            pl.BlockSpec((TB, n_wave), lambda b: (b, 0)),          # x tile
            pl.BlockSpec((TB, n_wave), lambda b: (b, 0)),          # y tile
            # Grid-invariant extinction-law table, resident in VMEM.
            # TODO(synk): production-size tables -> memory_space=pl.ANY + 2-row
            # DMA per batch element.
            pl.BlockSpec((NUM_AV, NUM_WL), lambda b: (0, 0)),
            pl.BlockSpec((TB, 1), lambda b: (b, 0)),               # distance
            pl.BlockSpec(memory_space=pltpu.MemorySpace.SMEM),     # av (Bp,) flat
        ],
        out_specs=pl.BlockSpec((TB, n_wave), lambda b: (b, 0)),
        scratch_shapes=[pltpu.VMEM((TB, n_wave), jnp.float32),     # ix coords
                        pltpu.VMEM((TB, n_wave), jnp.float32)],    # exponents
        compiler_params=pltpu.CompilerParams(
            dimension_semantics=("parallel",)),
    )(x, y, law, dist, av_flat)
    return out[:B]


# ----- pure-JAX reference (matches torch grid_sample border / align_corners=False)
def reference_forward(y, x, theta, law):
    dist = theta[:, -2:-1]
    av = theta[:, -1:]
    H, W = law.shape
    av_norm = 2.0 * (av - AV_MIN) / (AV_MAX - AV_MIN) - 1.0
    wl_norm = 2.0 * (jnp.log10(x) - LOG_WL_MIN) / (LOG_WL_MAX - LOG_WL_MIN) - 1.0
    iy = jnp.clip(((av_norm + 1.0) * H - 1.0) * 0.5, 0.0, H - 1.0)
    ix = jnp.clip(((wl_norm + 1.0) * W - 1.0) * 0.5, 0.0, W - 1.0)
    iy0 = jnp.floor(iy); ty = iy - iy0
    ix0 = jnp.floor(ix); tx = ix - ix0
    iy0i = iy0.astype(jnp.int32); iy1i = jnp.minimum(iy0i + 1, H - 1)
    ix0i = ix0.astype(jnp.int32); ix1i = jnp.minimum(ix0i + 1, W - 1)
    v00 = law[iy0i, ix0i]; v01 = law[iy0i, ix1i]
    v10 = law[iy1i, ix0i]; v11 = law[iy1i, ix1i]
    sampled = (v00 * (1 - ty) * (1 - tx) + v01 * (1 - ty) * tx
               + v10 * ty * (1 - tx) + v11 * ty * tx)
    ext = 10.0 ** (0.4 * sampled * av)
    y_corr = jnp.where(x < 40.0, y / ext, y)
    return y_corr * (REF_DIST ** 2) / (dist ** 2)


if __name__ == "__main__":
    key = jax.random.PRNGKey(0)
    B, n_wave = 16, 128
    k1, k2, k3, k4 = jax.random.split(key, 4)

    log_wl = jax.random.uniform(k1, (B, n_wave),
                                minval=LOG_WL_MIN + 0.05, maxval=LOG_WL_MAX - 0.05)
    x = jnp.sort(10.0 ** log_wl, axis=1).astype(jnp.float32)          # wavelengths (µm)
    y = jax.random.uniform(k2, (B, n_wave), minval=0.5, maxval=1.5).astype(jnp.float32)
    distance = jax.random.uniform(k3, (B, 1), minval=1.0, maxval=3.0).astype(jnp.float32)
    av = jax.random.uniform(k4, (B, 1), minval=0.2, maxval=9.5).astype(jnp.float32)
    theta = jnp.concatenate([distance, av], axis=1)                    # (B, 2): [dist, Av]

    law = jnp.asarray(build_extinction_law())                          # (NUM_AV, NUM_WL)

    out = extinction_scaling_forward(y, x, theta, law)
    out = jax.block_until_ready(out)

    ref = reference_forward(y, x, theta, law)
    np.testing.assert_allclose(np.asarray(out), np.asarray(ref), rtol=1e-3, atol=1e-5)

    print("KERNEL_OK")
</pallas_src>

<mosaic_0001>
module attributes {stable_mosaic.version = 11 : i64} {
  func.func @_ext_scale_kernel(%arg0: i32, %arg1: memref<8x128xf32, #tpu.memory_space<vmem>>, %arg2: memref<8x128xf32, #tpu.memory_space<vmem>>, %arg3: memref<128x256xf32, #tpu.memory_space<vmem>>, %arg4: memref<8x1xf32, #tpu.memory_space<vmem>>, %arg5: memref<16xf32, #tpu.memory_space<smem>>, %arg6: memref<8x128xf32, #tpu.memory_space<vmem>>, %arg7: memref<8x128xf32, #tpu.memory_space<vmem>>, %arg8: memref<8x128xf32, #tpu.memory_space<vmem>>) attributes {dimension_semantics = [#tpu.dimension_semantics<parallel>], iteration_bounds = array<i64: 2>, scalar_prefetch = 0 : i64, scratch_operands = 2 : i64, tpu.core_type = #tpu.core_type<tc>, window_params = [{transform_indices = @transform_0, window_bounds = array<i64: 8, 128>}, {transform_indices = @transform_1, window_bounds = array<i64: 8, 128>}, {pipeline_mode = #tpu.pipeline_mode<synchronous>, transform_indices = @transform_2, window_bounds = array<i64: 128, 256>}, {transform_indices = @transform_3, window_bounds = array<i64: 8, 1>}, {transform_indices = @transform_4, window_bounds = array<i64: 16>}, {transform_indices = @transform_5, window_bounds = array<i64: 8, 128>}]} {
    %c8_i32 = arith.constant 8 : i32
    %0 = arith.muli %arg0, %c8_i32 : i32
    %c0 = arith.constant 0 : index
    %c0_0 = arith.constant 0 : index
    %1 = vector.load %arg1[%c0, %c0_0] : memref<8x128xf32, #tpu.memory_space<vmem>>, vector<8x128xf32>
    %2 = math.log %1 : vector<8x128xf32>
    %cst = arith.constant 0.434294492 : f32
    %3 = vector.broadcast %cst : f32 to vector<8x128xf32>
    %4 = arith.mulf %2, %3 : vector<8x128xf32>
    %cst_1 = arith.constant -0.522878766 : f32
    %5 = vector.broadcast %cst_1 : f32 to vector<8x128xf32>
    %6 = arith.subf %4, %5 : vector<8x128xf32>
    %cst_2 = arith.constant 2.000000e+00 : f32
    %7 = vector.broadcast %cst_2 : f32 to vector<8x128xf32>
    %8 = arith.mulf %7, %6 : vector<8x128xf32>
    %cst_3 = arith.constant 2.22184873 : f32
    %9 = vector.broadcast %cst_3 : f32 to vector<8x128xf32>
    %10 = arith.divf %8, %9 : vector<8x128xf32>
    %cst_4 = arith.constant 1.000000e+00 : f32
    %11 = vector.broadcast %cst_4 : f32 to vector<8x128xf32>
    %12 = arith.subf %10, %11 : vector<8x128xf32>
    %cst_5 = arith.constant 1.000000e+00 : f32
    %13 = vector.broadcast %cst_5 : f32 to vector<8x128xf32>
    %14 = arith.addf %12, %13 : vector<8x128xf32>
    %cst_6 = arith.constant 2.560000e+02 : f32
    %15 = vector.broadcast %cst_6 : f32 to vector<8x128xf32>
    %16 = arith.mulf %14, %15 : vector<8x128xf32>
    %cst_7 = arith.constant 1.000000e+00 : f32
    %17 = vector.broadcast %cst_7 : f32 to vector<8x128xf32>
    %18 = arith.subf %16, %17 : vector<8x128xf32>
    %cst_8 = arith.constant 5.000000e-01 : f32
    %19 = vector.broadcast %cst_8 : f32 to vector<8x128xf32>
    %20 = arith.mulf %18, %19 : vector<8x128xf32>
    %cst_9 = arith.constant 0.000000e+00 : f32
    %cst_10 = arith.constant 2.550000e+02 : f32
    %21 = vector.broadcast %cst_9 : f32 to vector<8x128xf32>
    %22 = arith.maximumf %21, %20 : vector<8x128xf32>
    %23 = vector.broadcast %cst_10 : f32 to vector<8x128xf32>
    %24 = arith.minimumf %23, %22 : vector<8x128xf32>
    %c0_11 = arith.constant 0 : index
    %c0_12 = arith.constant 0 : index
    %25 = vector.load %arg7[%c0_11, %c0_12] : memref<8x128xf32, #tpu.memory_space<vmem>>, vector<8x128xf32>
    tpu.vector_store %arg7[%c0_11, %c0_12], %24 {strides = array<i32>} : memref<8x128xf32, #tpu.memory_space<vmem>>, vector<8x128xf32>,
    %26 = tpu.iota {dimensions = array<i32: 0>} : vector<256x128xi32>
    %27 = arith.sitofp %26 : vector<256x128xi32> to vector<256x128xf32>
    %c0_i32 = arith.constant 0 : i32
    %c8_i32_13 = arith.constant 8 : i32
    %28 = arith.addi %c0_i32, %c8_i32_13 : i32
    %c1_i32 = arith.constant 1 : i32
    scf.for %arg9 = %c0_i32 to %28 step %c1_i32  : i32 {
      %c1_i32_25 = arith.constant 1 : i32
      %43 = arith.muli %arg9, %c1_i32_25 : i32
      %c0_i32_26 = arith.constant 0 : i32
      %44 = arith.addi %c0_i32_26, %43 : i32
      %45 = arith.addi %0, %44 : i32
      %46 = arith.index_cast %45 : i32 to index
      %47 = memref.load %arg5[%46] : memref<16xf32, #tpu.memory_space<smem>>
      %cst_27 = arith.constant 0.000000e+00 : f32
      %48 = arith.subf %47, %cst_27 : f32
      %cst_28 = arith.constant 2.000000e+00 : f32
      %49 = arith.mulf %cst_28, %48 : f32
      %cst_29 = arith.constant 1.000000e+01 : f32
      %50 = arith.divf %49, %cst_29 : f32
      %cst_30 = arith.constant 1.000000e+00 : f32
      %51 = arith.subf %50, %cst_30 : f32
      %cst_31 = arith.constant 1.000000e+00 : f32
      %52 = arith.addf %51, %cst_31 : f32
      %cst_32 = arith.constant 1.280000e+02 : f32
      %53 = arith.mulf %52, %cst_32 : f32
      %cst_33 = arith.constant 1.000000e+00 : f32
      %54 = arith.subf %53, %cst_33 : f32
      %cst_34 = arith.constant 5.000000e-01 : f32
      %55 = arith.mulf %54, %cst_34 : f32
      %cst_35 = arith.constant 0.000000e+00 : f32
      %cst_36 = arith.constant 1.270000e+02 : f32
      %56 = arith.maximumf %cst_35, %55 : f32
      %57 = arith.minimumf %cst_36, %56 : f32
      %58 = math.floor %57 : f32
      %59 = arith.subf %57, %58 : f32
      %60 = arith.fptosi %58 : f32 to i32
      %c1_i32_37 = arith.constant 1 : i32
      %61 = arith.addi %60, %c1_i32_37 : i32
      %c127_i32 = arith.constant 127 : i32
      %62 = arith.minsi %61, %c127_i32 : i32
      %cst_38 = arith.constant -0.921034038 : f32
      %63 = arith.mulf %cst_38, %47 : f32
      %cst_39 = arith.constant 1.000000e+00 : f32
      %64 = arith.subf %cst_39, %59 : f32
      %65 = arith.mulf %63, %64 : f32
      %66 = arith.mulf %63, %59 : f32
      %67 = arith.index_cast %60 : i32 to index
      %c0_40 = arith.constant 0 : index
      %68 = vector.load %arg3[%67, %c0_40] : memref<128x256xf32, #tpu.memory_space<vmem>>, vector<1x256xf32>
      %69 = arith.index_cast %62 : i32 to index
      %c0_41 = arith.constant 0 : index
      %70 = vector.load %arg3[%69, %c0_41] : memref<128x256xf32, #tpu.memory_space<vmem>>, vector<1x256xf32>
      %71 = vector.broadcast %65 : f32 to vector<1x256xf32>
      %72 = arith.mulf %68, %71 : vector<1x256xf32>
      %73 = vector.broadcast %66 : f32 to vector<1x256xf32>
      %74 = arith.mulf %70, %73 : vector<1x256xf32>
      %75 = arith.addf %72, %74 : vector<1x256xf32>
      %76 = arith.index_cast %44 : i32 to index
      %c0_42 = arith.constant 0 : index
      %77 = vector.load %arg7[%76, %c0_42] : memref<8x128xf32, #tpu.memory_space<vmem>>, vector<1x128xf32>
      %78 = vector.broadcast %77 : vector<1x128xf32> to vector<256x128xf32>
      %79 = arith.subf %27, %78 : vector<256x128xf32>
      %80 = math.absf %79 : vector<256x128xf32>
      %cst_43 = arith.constant 1.000000e+00 : f32
      %81 = vector.broadcast %cst_43 : f32 to vector<256x128xf32>
      %82 = arith.subf %81, %80 : vector<256x128xf32>
      %cst_44 = arith.constant 0.000000e+00 : f32
      %83 = vector.broadcast %cst_44 : f32 to vector<256x128xf32>
      %84 = arith.maximumf %82, %83 : vector<256x128xf32>
      %cst_45 = arith.constant dense<0.000000e+00> : vector<1x128xf32>
      %85 = tpu.matmul %75, %84, %cst_45 {dimension_numbers = #tpu.dot_dimension_numbers<[1], [0], [0], [1], [0, 0, 1, 1], [], []>, precision = #tpu.contract_precision<fp32>} : vector<1x256xf32>, vector<256x128xf32>, vector<1x128xf32> -> vector<1x128xf32>
      %86 = arith.index_cast %44 : i32 to index
      %c0_46 = arith.constant 0 : index
      %87 = vector.load %arg8[%86, %c0_46] : memref<8x128xf32, #tpu.memory_space<vmem>>, vector<1x128xf32>
      tpu.vector_store %arg8[%86, %c0_46], %85 {strides = array<i32>} : memref<8x128xf32, #tpu.memory_space<vmem>>, vector<1x128xf32>,
    }
    %c8_i32_14 = arith.constant 8 : i32
    %c0_15 = arith.constant 0 : index
    %c0_16 = arith.constant 0 : index
    %29 = vector.load %arg2[%c0_15, %c0_16] : memref<8x128xf32, #tpu.memory_space<vmem>>, vector<8x128xf32>
    %c0_17 = arith.constant 0 : index
    %c0_18 = arith.constant 0 : index
    %30 = vector.load %arg8[%c0_17, %c0_18] : memref<8x128xf32, #tpu.memory_space<vmem>>, vector<8x128xf32>
    %31 = math.exp %30 : vector<8x128xf32>
    %cst_19 = arith.constant 4.000000e+01 : f32
    %32 = vector.broadcast %cst_19 : f32 to vector<8x128xf32>
    %33 = arith.cmpf olt, %1, %32 : vector<8x128xf32>
    %34 = arith.mulf %29, %31 : vector<8x128xf32>
    %35 = arith.select %33, %34, %29 : vector<8x128xi1>, vector<8x128xf32>
    %c0_20 = arith.constant 0 : index
    %c0_21 = arith.constant 0 : index
    %36 = vector.load %arg4[%c0_20, %c0_21] : memref<8x1xf32, #tpu.memory_space<vmem>>, vector<8x1xf32>
    %cst_22 = arith.constant 1.000000e+00 : f32
    %37 = vector.broadcast %cst_22 : f32 to vector<8x1xf32>
    %38 = arith.divf %37, %36 : vector<8x1xf32>
    %39 = arith.mulf %38, %38 : vector<8x1xf32>
    %40 = vector.broadcast %39 : vector<8x1xf32> to vector<8x128xf32>
    %41 = arith.mulf %35, %40 : vector<8x128xf32>
    %c0_23 = arith.constant 0 : index
    %c0_24 = arith.constant 0 : index
    %42 = vector.load %arg6[%c0_23, %c0_24] : memref<8x128xf32, #tpu.memory_space<vmem>>, vector<8x128xf32>
    tpu.vector_store %arg6[%c0_23, %c0_24], %41 {strides = array<i32>} : memref<8x128xf32, #tpu.memory_space<vmem>>, vector<8x128xf32>,
    return
  }
  func.func @transform_0(%arg0: i32) -> (i32, i32) {
    %c0_i32 = arith.constant 0 : i32
    %c0_i32_0 = arith.constant 0 : i32
    return %arg0, %c0_i32 : i32, i32
  }
  func.func @transform_1(%arg0: i32) -> (i32, i32) {
    %c0_i32 = arith.constant 0 : i32
    %c0_i32_0 = arith.constant 0 : i32
    return %arg0, %c0_i32 : i32, i32
  }
  func.func @transform_2(%arg0: i32) -> (i32, i32) {
    %c0_i32 = arith.constant 0 : i32
    %c0_i32_0 = arith.constant 0 : i32
    %c0_i32_1 = arith.constant 0 : i32
    return %c0_i32, %c0_i32_0 : i32, i32
  }
  func.func @transform_3(%arg0: i32) -> (i32, i32) {
    %c0_i32 = arith.constant 0 : i32
    %c0_i32_0 = arith.constant 0 : i32
    return %arg0, %c0_i32 : i32, i32
  }
  func.func @transform_4(%arg0: i32) -> i32 {
    %c0_i32 = arith.constant 0 : i32
    %c0_i32_0 = arith.constant 0 : i32
    return %c0_i32 : i32
  }
  func.func @transform_5(%arg0: i32) -> (i32, i32) {
    %c0_i32 = arith.constant 0 : i32
    %c0_i32_0 = arith.constant 0 : i32
    return %arg0, %c0_i32 : i32, i32
  }
}

</mosaic_0001>

<llo_original>
// kernel: extinction_scaling_forward.1
$region0: #{extinction_scaling_forward.1}
  #allocation0 [shape = 'u32[]', space=smem, size = 0x4, offset = 0x4, fixed_abs, tag = 'smem constant byte address 0x4 - core index']
  #allocation1 [shape = 'u32[144,128]{1,0:T(1,128)}', space=vmem, size = 0x12000, scoped, tag = 'internal scratch']
  #allocation2 [shape = 'f32[8,128]{1,0:T(8,128)}', space=vmem, size = 0x1000, scoped, tag = 'scratch operand']
  #allocation3 [shape = 'f32[8,128]{1,0:T(8,128)}', space=vmem, size = 0x1000, scoped, tag = 'scratch operand']
  %s0 = inlined_call_operand.vmem [shape: f32[16,128], index: 0, kind: input, shape index: {}]
  %s1 = inlined_call_operand.vmem [shape: f32[16,128], index: 1, kind: input, shape index: {}]
  %s2 = inlined_call_operand.hbm [shape: f32[128,256], index: 2, kind: input, shape index: {}]
  %s3 = inlined_call_operand.vmem [shape: f32[16,1], index: 3, kind: input, shape index: {}]
  %s4 = inlined_call_operand.vmem [shape: f32[16], index: 4, kind: input, shape index: {}]
  %s5 = inlined_call_operand.hbm [shape: f32[16,128], index: 5, kind: output, shape index: {}]
  %s6 = sld [smem:[#allocation0]]
  $region68: #{extinction_scaling_forward.1} parent=0
    _
  %s8 = ssub.s32 1, %s6
  %s9 = scalar_select 0, %s8, %s6
  $region1: #{extinction_scaling_forward.1} parent=0
    #allocation4 [shape = 'u8[131072]{0}', space=vmem, size = 0x20000, scoped, tag = 'input window, operand 2, single buffered']
    #allocation5 [shape = 's32[2]{0}', space=sflag, size = 0x8, scoped, tag = 'scoped memory for extinction_scaling_forward.1']
    #allocation6 [shape = 's32[2]{0}', space=sflag, size = 0x8, scoped, tag = 'scoped memory for extinction_scaling_forward.1']
    #allocation7 [shape = 's32[2]{0}', space=sflag, size = 0x8, scoped, tag = 'scoped memory for extinction_scaling_forward.1']
    #allocation8 [shape = 'u8[512]{0}', space=smem, size = 0x200, scoped, tag = 'input window, operand 4, single buffered']
    #allocation9 [shape = 'u8[8192]{0}', space=vmem, size = 0x2000, scoped, tag = 'output window, operand 0']
    %10 = vsyncpa [#allocation5], 0
    %11 = vsyncpa [#allocation7], 0
    %12 = vsyncpa [#allocation6], 0
    %s13 = scalar_lea.sflag [#allocation6], 1
    %14 = vsyncpa %s13, 0
    loop: start=0, step=1, limit=4
    $region2: #{extinction_scaling_forward.1} parent=1 // loop_pre_header
      _
    $region3: #{extinction_scaling_forward.1} parent=1 // loop_header
      %s16 = sphi 0, %s20
      %p17 = scmp.ge.s32.totalorder %s16, 4
      %s26 = sphi 0, %s28
      %s29 = sphi 0, %s26
      %s30 = sphi 0, %s29
      %s46 = sphi 0, %s30
      %s52 = sphi 0, %s54
      %s55 = sphi 0, %s52
      %s56 = sphi 0, %s55
      %s72 = sphi 0, %s56
      %s76 = sphi 0, %s76
      %s78 = sphi 0, %s76
      %s79 = sphi 0, %s78
      %s93 = sphi 0, %s79
      %s99 = sphi 0, %s101
      %s102 = sphi 0, %s99
      %s103 = sphi 0, %s102
      %s119 = sphi 0, %s103
      %s123 = sphi 0, %s123
      %s125 = sphi 0, %s123
      %s126 = sphi 0, %s125
      %s140 = sphi 0, %s126
      %s146 = sphi 0, %s148
      %s149 = sphi 0, %s146
      %s150 = sphi 0, %s149
      %s166 = sphi 0, %s150
    $region4: #{extinction_scaling_forward.1} parent=1 // loop_header_branch
      %19 = sbr.rel (%p17) target = $region8
    $region5: #{extinction_scaling_forward.1} parent=1 // loop_body
      %s21 = ssub.s32 %s16, 1
      %s22 = ssub.s32 %s16, 2
      %s23 = sadd.s32 %s16, 1
      %s24 = ssub.s32 %s16, %s23
      %p25 = scmp.eq.s32.totalorder %s24, 0
      %s27 = sadd.s32 %s26, 1
      %s28 = scalar_select %p25, %s26, %s27
      %p31 = pneg %p25
      %p32 = scmp.eq.s32.totalorder %s16, 1
      %p33 = por %p31, %p32
      %p34 = scmp.ne.s32.totalorder %s26, %s29
      %p35 = scmp.eq.s32.totalorder %s16, 0
      %p36 = por %p34, %p35
      %p37 = scmp.ne.s32.totalorder %s26, %s29
      %p38 = scmp.eq.s32.totalorder %s21, 1
      %p39 = por %p37, %p38
      %p40 = scmp.ne.s32.totalorder %s29, %s30
      %p41 = scmp.eq.s32.totalorder %s21, 0
      %p42 = por %p40, %p41
      %p43 = scmp.ne.s32.totalorder %s29, %s30
      %p44 = scmp.eq.s32.totalorder %s22, 1
      %p45 = por %p43, %p44
      %p47 = scmp.ne.s32.totalorder %s30, %s46
      %p48 = scmp.eq.s32.totalorder %s22, 0
      %p49 = por %p47, %p48
      %s50 = ssub.s32 %s16, %s23
      %p51 = scmp.eq.s32.totalorder %s50, 0
      %s53 = sadd.s32 %s52, 1
      %s54 = scalar_select %p51, %s52, %s53
      %p57 = pneg %p51
      %p58 = scmp.eq.s32.totalorder %s16, 1
      %p59 = por %p57, %p58
      %p60 = scmp.ne.s32.totalorder %s52, %s55
      %p61 = scmp.eq.s32.totalorder %s16, 0
      %p62 = por %p60, %p61
      %p63 = scmp.ne.s32.totalorder %s52, %s55
      %p64 = scmp.eq.s32.totalorder %s21, 1
      %p65 = por %p63, %p64
      %p66 = scmp.ne.s32.totalorder %s55, %s56
      %p67 = scmp.eq.s32.totalorder %s21, 0
      %p68 = por %p66, %p67
      %p69 = scmp.ne.s32.totalorder %s55, %s56
      %p70 = scmp.eq.s32.totalorder %s22, 1
      %p71 = por %p69, %p70
      %p73 = scmp.ne.s32.totalorder %s56, %s72
      %p74 = scmp.eq.s32.totalorder %s22, 0
      %p75 = por %p73, %p74
      %s77 = sadd.s32 %s76, 1
      %p80 = scmp.eq.s32.totalorder %s16, 1
      %p81 = scmp.ne.s32.totalorder %s76, %s78
      %p82 = scmp.eq.s32.totalorder %s16, 0
      %p83 = por %p81, %p82
      %p84 = scmp.ne.s32.totalorder %s76, %s78
      %p85 = scmp.eq.s32.totalorder %s21, 1
      %p86 = por %p84, %p85
      %p87 = scmp.ne.s32.totalorder %s78, %s79
      %p88 = scmp.eq.s32.totalorder %s21, 0
      %p89 = por %p87, %p88
      %p90 = scmp.ne.s32.totalorder %s78, %s79
      %p91 = scmp.eq.s32.totalorder %s22, 1
      %p92 = por %p90, %p91
      %p94 = scmp.ne.s32.totalorder %s79, %s93
      %p95 = scmp.eq.s32.totalorder %s22, 0
      %p96 = por %p94, %p95
      %s97 = ssub.s32 %s16, %s23
      %p98 = scmp.eq.s32.totalorder %s97, 0
      %s100 = sadd.s32 %s99, 1
      %s101 = scalar_select %p98, %s99, %s100
      %p104 = pneg %p98
      %p105 = scmp.eq.s32.totalorder %s16, 1
      %p106 = por %p104, %p105
      %p107 = scmp.ne.s32.totalorder %s99, %s102
      %p108 = scmp.eq.s32.totalorder %s16, 0
      %p109 = por %p107, %p108
      %p110 = scmp.ne.s32.totalorder %s99, %s102
      %p111 = scmp.eq.s32.totalorder %s21, 1
      %p112 = por %p110, %p111
      %p113 = scmp.ne.s32.totalorder %s102, %s103
      %p114 = scmp.eq.s32.totalorder %s21, 0
      %p115 = por %p113, %p114
      %p116 = scmp.ne.s32.totalorder %s102, %s103
      %p117 = scmp.eq.s32.totalorder %s22, 1
      %p118 = por %p116, %p117
      %p120 = scmp.ne.s32.totalorder %s103, %s119
      %p121 = scmp.eq.s32.totalorder %s22, 0
      %p122 = por %p120, %p121
      %s124 = sadd.s32 %s123, 1
      %p127 = scmp.eq.s32.totalorder %s16, 1
      %p128 = scmp.ne.s32.totalorder %s123, %s125
      %p129 = scmp.eq.s32.totalorder %s16, 0
      %p130 = por %p128, %p129
      %p131 = scmp.ne.s32.totalorder %s123, %s125
      %p132 = scmp.eq.s32.totalorder %s21, 1
      %p133 = por %p131, %p132
      %p134 = scmp.ne.s32.totalorder %s125, %s126
      %p135 = scmp.eq.s32.totalorder %s21, 0
      %p136 = por %p134, %p135
      %p137 = scmp.ne.s32.totalorder %s125, %s126
      %p138 = scmp.eq.s32.totalorder %s22, 1
      %p139 = por %p137, %p138
      %p141 = scmp.ne.s32.totalorder %s126, %s140
      %p142 = scmp.eq.s32.totalorder %s22, 0
      %p143 = por %p141, %p142
      %s144 = ssub.s32 %s16, %s23
      %p145 = scmp.eq.s32.totalorder %s144, 0
      %s147 = sadd.s32 %s146, 1
      %s148 = scalar_select %p145, %s146, %s147
      %p151 = pneg %p145
      %p152 = scmp.eq.s32.totalorder %s16, 1
      %p153 = por %p151, %p152
      %p154 = scmp.ne.s32.totalorder %s146, %s149
      %p155 = scmp.eq.s32.totalorder %s16, 0
      %p156 = por %p154, %p155
      %p157 = scmp.ne.s32.totalorder %s146, %s149
      %p158 = scmp.eq.s32.totalorder %s21, 1
      %p159 = por %p157, %p158
      %p160 = scmp.ne.s32.totalorder %s149, %s150
      %p161 = scmp.eq.s32.totalorder %s21, 0
      %p162 = por %p160, %p161
      %p163 = scmp.ne.s32.totalorder %s149, %s150
      %p164 = scmp.eq.s32.totalorder %s22, 1
      %p165 = por %p163, %p164
      %p167 = scmp.ne.s32.totalorder %s150, %s166
      %p168 = scmp.eq.s32.totalorder %s22, 0
      %p169 = por %p167, %p168
      %p170 = scmp.le.s32.totalorder 1, %s16
      %p171 = scmp.lt.s32.totalorder %s16, 3
      %p172 = pnand %p170, %p171
      %p173 = pneg %p172
      // Predicated region
      $region9: #{extinction_scaling_forward.1} parent=5 // pred_check
        _
      $region10: #{extinction_scaling_forward.1} parent=5 // pred_check_branch
        %175 = sbr.rel (%p172) target = $region12
      $region11: #{extinction_scaling_forward.1} parent=5 // pred_region
        %s176 = ssub.s32 %s16, 1
        // Predicated region
        $region13: #{extinction_scaling_forward.1} parent=11 // pred_check
          %p177 = pneg %p89
        $region14: #{extinction_scaling_forward.1} parent=11 // pred_check_branch
          %179 = sbr.rel (%p177) target = $region16
        $region15: #{extinction_scaling_forward.1} parent=11 // pred_region
          %s181 = ssub.s32 4096, 4096
          %182 = vsyncadd [#allocation5], %s181
          %s183 = sshll.u32 [#allocation4], 4
          %s184 = int_to_ptr.vmem [resolvable:$true] %s183
          %189 = dma.hbm_to_vmem [thread:$0]  %s2, 4096, %s184, [#allocation5], 256, 256, 16
        $region16: #{extinction_scaling_forward.1} parent=11 // pred_fallthru
          _
        // Predicated region
        $region17: #{extinction_scaling_forward.1} parent=11 // pred_check
          %p190 = pneg %p136
        $region18: #{extinction_scaling_forward.1} parent=11 // pred_check_branch
          %192 = sbr.rel (%p190) target = $region20
        $region19: #{extinction_scaling_forward.1} parent=11 // pred_region
          %s194 = ssub.s32 16, 16
          %195 = vsyncadd [#allocation7], %s194
          %s197 = sshll.u32 %s4, 4
          %s198 = int_to_ptr.vmem [resolvable:$true] %s197
          %200 = dma.vmem_to_smem %s198, 16, [#allocation8], [#allocation7]
        $region20: #{extinction_scaling_forward.1} parent=11 // pred_fallthru
          _
      $region12: #{extinction_scaling_forward.1} parent=5 // pred_fallthru
        _
      %p201 = scmp.lt.s32.totalorder %s16, 2
      // Predicated region
      $region21: #{extinction_scaling_forward.1} parent=5 // pred_check
        %p202 = pneg %p201
      $region22: #{extinction_scaling_forward.1} parent=5 // pred_check_branch
        %204 = sbr.rel (%p202) target = $region24
      $region23: #{extinction_scaling_forward.1} parent=5 // pred_region
        // Predicated region
        $region25: #{extinction_scaling_forward.1} parent=23 // pred_check
          %p205 = pneg %p36
        $region26: #{extinction_scaling_forward.1} parent=23 // pred_check_branch
          %207 = sbr.rel (%p205) target = $region28
        $region27: #{extinction_scaling_forward.1} parent=23 // pred_region
          %p208 = scmp.lt.s32.totalorder %s16, 1
          %s209 = scalar_select %p208, %s16, 1
          %s210 = smul.addr %s209, 8
          %s211 = scalar_lea.vmem %s0, %s210
        $region28: #{extinction_scaling_forward.1} parent=23 // pred_fallthru
          _
        // Predicated region
        $region29: #{extinction_scaling_forward.1} parent=23 // pred_check
          %p212 = pneg %p62
        $region30: #{extinction_scaling_forward.1} parent=23 // pred_check_branch
          %214 = sbr.rel (%p212) target = $region32
        $region31: #{extinction_scaling_forward.1} parent=23 // pred_region
          %p215 = scmp.lt.s32.totalorder %s16, 1
          %s216 = scalar_select %p215, %s16, 1
          %s217 = smul.addr %s216, 8
          %s218 = scalar_lea.vmem %s1, %s217
        $region32: #{extinction_scaling_forward.1} parent=23 // pred_fallthru
          _
        // Predicated region
        $region33: #{extinction_scaling_forward.1} parent=23 // pred_check
          %p219 = pneg %p109
        $region34: #{extinction_scaling_forward.1} parent=23 // pred_check_branch
          %221 = sbr.rel (%p219) target = $region36
        $region35: #{extinction_scaling_forward.1} parent=23 // pred_region
          %p222 = scmp.lt.s32.totalorder %s16, 1
          %s223 = scalar_select %p222, %s16, 1
          %s224 = smul.addr %s223, 8
          %s225 = scalar_lea.vmem %s3, %s224
        $region36: #{extinction_scaling_forward.1} parent=23 // pred_fallthru
          _
      $region24: #{extinction_scaling_forward.1} parent=5 // pred_fallthru
        _
      %p226 = scmp.le.s32.totalorder 1, %s16
      %p227 = scmp.lt.s32.totalorder %s16, 3
      %p228 = pnand %p226, %p227
      %p229 = pneg %p228
      // Predicated region
      $region37: #{extinction_scaling_forward.1} parent=5 // pred_check
        _
      $region38: #{extinction_scaling_forward.1} parent=5 // pred_check_branch
        %231 = sbr.rel (%p228) target = $region40
      $region39: #{extinction_scaling_forward.1} parent=5 // pred_region
        %s232 = ssub.s32 %s16, 1
        // Predicated region
        $region41: #{extinction_scaling_forward.1} parent=39 // pred_check
          %p233 = pneg %p89
        $region42: #{extinction_scaling_forward.1} parent=39 // pred_check_branch
          %235 = sbr.rel (%p233) target = $region44
        $region43: #{extinction_scaling_forward.1} parent=39 // pred_region
          %236 = dma.done [#allocation5], 4096
        $region44: #{extinction_scaling_forward.1} parent=39 // pred_fallthru
          _
        // Predicated region
        $region45: #{extinction_scaling_forward.1} parent=39 // pred_check
          %p237 = pneg %p136
        $region46: #{extinction_scaling_forward.1} parent=39 // pred_check_branch
          %239 = sbr.rel (%p237) target = $region48
        $region47: #{extinction_scaling_forward.1} parent=39 // pred_region
          %240 = dma.done [#allocation7], 16
        $region48: #{extinction_scaling_forward.1} parent=39 // pred_fallthru
          _
        %241 = sfence
        %p242 = scmp.lt.s32.totalorder %s21, 1
        %s243 = scalar_select %p242, %s21, 1
        %s244 = smul.addr %s243, 8
        %s245 = scalar_lea.vmem %s0, %s244
        %p246 = pneg %p42
        %p247 = pneg %p39
        %p248 = scmp.lt.s32.totalorder %s21, 1
        %s249 = scalar_select %p248, %s21, 1
        %s250 = smul.addr %s249, 8
        %s251 = scalar_lea.vmem %s1, %s250
        %p252 = pneg %p68
        %p253 = pneg %p65
        %p254 = pneg %p89
        %p255 = pneg %p86
        %p256 = scmp.lt.s32.totalorder %s21, 1
        %s257 = scalar_select %p256, %s21, 1
        %s258 = smul.addr %s257, 8
        %s259 = scalar_lea.vmem %s3, %s258
        %p260 = pneg %p115
        %p261 = pneg %p112
        %p262 = pneg %p136
        %p263 = pneg %p133
        %p264 = pneg %p162
        %p265 = pneg %p159
        %s266 = sand.u32 %s149, 1
        %s267 = scalar_lea.sflag [#allocation6], %s266
        %s268 = sand.u32 %s149, 1
        %s269 = smul.addr %s268, 8
        %s270 = scalar_lea.vmem [#allocation9], %s269
        %p271 = scmp.lt.s32.totalorder %s21, 1
        %s272 = scalar_select %p271, %s21, 1
        %s273 = smul.addr %s272, 8
        %s274 = scalar_lea.vmem %s0, %s273
        %p275 = scmp.lt.s32.totalorder %s21, 1
        %s276 = scalar_select %p275, %s21, 1
        %s277 = smul.addr %s276, 8
        %s278 = scalar_lea.vmem %s1, %s277
        %p279 = scmp.lt.s32.totalorder %s21, 1
        %s280 = scalar_select %p279, %s21, 1
        %s281 = smul.addr %s280, 8
        %s282 = scalar_lea.vmem %s3, %s281
        %s283 = smul.u32 %s21, 8
        %v284 = vld [vmem:[%s274] sm:$0xff]
        %v285 = vlog2.pop %v284
        %v286 = vmul.f32 %v285, 0.6931472
        %v287 = vmul.f32 %v286, 0.4342945
        %v288 = vsub.f32 %v287, -0.52287877
        %v289 = vmul.f32 %v288, 2.0
        %v290 = vrcp.pop 2.2218487
        %v291 = vmul.f32 %v289, %v290
        %v292 = vsub.f32 %v291, 1.0
        %v293 = vadd.f32 %v292, 1.0
        %v294 = vmul.f32 %v293, 256.0
        %v295 = vsub.f32 %v294, 1.0
        %v296 = vmul.f32 %v295, 0.5
        %v297 = vmax.f32 %v296, 0.0
        %v298 = vmin.f32 %v297, 255.0
        %299 = vst [vmem:[#allocation2] sm:$0xff] %v298
        %v300 = vlaneseq
        %v301 = vshrl.u32 %v300, 7
        %v302 = vadd.s32 %v301, 8
        %v303 = vadd.s32 %v301, 16
        %v304 = vadd.s32 %v301, 24
        %v305 = vadd.s32 %v301, 32
        %v306 = vadd.s32 %v301, 40
        %v307 = vadd.s32 %v301, 48
        %v308 = vadd.s32 %v301, 56
        %v309 = vadd.s32 %v301, 64
        %v310 = vadd.s32 %v301, 72
        %v311 = vadd.s32 %v301, 80
        %v312 = vadd.s32 %v301, 88
        %v313 = vadd.s32 %v301, 96
        %v314 = vadd.s32 %v301, 104
        %v315 = vadd.s32 %v301, 112
        %v316 = vadd.s32 %v301, 120
        %v317 = vadd.s32 %v301, 128
        %v318 = vadd.s32 %v301, 136
        %v319 = vadd.s32 %v301, 144
        %v320 = vadd.s32 %v301, 152
        %v321 = vadd.s32 %v301, 160
        %v322 = vadd.s32 %v301, 168
        %v323 = vadd.s32 %v301, 176
        %v324 = vadd.s32 %v301, 184
        %v325 = vadd.s32 %v301, 192
        %v326 = vadd.s32 %v301, 200
        %v327 = vadd.s32 %v301, 208
        %v328 = vadd.s32 %v301, 216
        %v329 = vadd.s32 %v301, 224
        %v330 = vadd.s32 %v301, 232
        %v331 = vadd.s32 %v301, 240
        %v332 = vadd.s32 %v301, 248
        %v333 = vcvt.s32.f32 %v301
        %v334 = vcvt.s32.f32 %v302
        %v335 = vcvt.s32.f32 %v303
        %v336 = vcvt.s32.f32 %v304
        %v337 = vcvt.s32.f32 %v305
        %v338 = vcvt.s32.f32 %v306
        %v339 = vcvt.s32.f32 %v307
        %v340 = vcvt.s32.f32 %v308
        %v341 = vcvt.s32.f32 %v309
        %v342 = vcvt.s32.f32 %v310
        %v343 = vcvt.s32.f32 %v311
        %v344 = vcvt.s32.f32 %v312
        %v345 = vcvt.s32.f32 %v313
        %v346 = vcvt.s32.f32 %v314
        %v347 = vcvt.s32.f32 %v315
        %v348 = vcvt.s32.f32 %v316
        %v349 = vcvt.s32.f32 %v317
        %v350 = vcvt.s32.f32 %v318
        %v351 = vcvt.s32.f32 %v319
        %v352 = vcvt.s32.f32 %v320
        %v353 = vcvt.s32.f32 %v321
        %v354 = vcvt.s32.f32 %v322
        %v355 = vcvt.s32.f32 %v323
        %v356 = vcvt.s32.f32 %v324
        %v357 = vcvt.s32.f32 %v325
        %v358 = vcvt.s32.f32 %v326
        %v359 = vcvt.s32.f32 %v327
        %v360 = vcvt.s32.f32 %v328
        %v361 = vcvt.s32.f32 %v329
        %v362 = vcvt.s32.f32 %v330
        %v363 = vcvt.s32.f32 %v331
        %v364 = vcvt.s32.f32 %v332
        loop: start=0, step=1, limit=8
        $region49: #{extinction_scaling_forward.1} parent=39 // loop_pre_header
          _
        $region50: #{extinction_scaling_forward.1} parent=39 // loop_header
          %s366 = sphi 0, %s370
          %p367 = scmp.ge.s32.totalorder %s366, 8
        $region51: #{extinction_scaling_forward.1} parent=39 // loop_header_branch
          %369 = sbr.rel (%p367) target = $region55
        $region52: #{extinction_scaling_forward.1} parent=39 // loop_body
          %s371 = sadd.s32 %s283, %s366
          %s372 = sld [smem:[#allocation8 + %s371]]
          %s373 = smul.f32 %s372, 2.0
          %v374 = vrcp.pop 10.0
          %s375 = vtos %v374
          %s376 = smul.f32 %s373, %s375
          %s377 = ssub.f32 %s376, 1.0
          %s378 = sadd.f32 %s377, 1.0
          %s379 = smul.f32 %s378, 128.0
          %s380 = ssub.f32 %s379, 1.0
          %s381 = smul.f32 %s380, 0.5
          %s382 = smax.f32 %s381, 0.0
          %s383 = smin.f32 %s382, 127.0
          %s384 = sfloor.f32 %s383
          %s385 = ssub.f32 %s383, %s384
          %s386 = scvt.f32.s32.to.zero.pseudo %s384
          %s387 = sadd.s32 %s386, 1
          %p388 = scmp.lt.s32.totalorder %s387, 127
          %s389 = scalar_select %p388, %s387, 127
          %s390 = smul.f32 %s372, -0.92103404
          %s391 = ssub.f32 1.0, %s385
          %s392 = smul.f32 %s390, %s391
          %s393 = smul.f32 %s390, %s385
          %s394 = sshra.s32 %s386, 3
          %s395 = sand.u32 %s386, 7
          %s396 = sshra.s32 %s386, 3
          %s397 = sand.u32 %s386, 7
          %s398 = smul.u32 %s394, 2
          %s399 = smul.u32 %s398, 8
          %s400 = sadd.s32 %s399, %s397
          %s401 = scalar_lea.vmem [#allocation4], %s400
          %v402 = vld [vmem:[%s401] ss:$8 sm:$0x3]
          %s403 = sshra.s32 %s389, 3
          %s404 = sand.u32 %s389, 7
          %s405 = sshra.s32 %s389, 3
          %s406 = sand.u32 %s389, 7
          %s407 = smul.u32 %s403, 2
          %s408 = smul.u32 %s407, 8
          %s409 = sadd.s32 %s408, %s406
          %s410 = scalar_lea.vmem [#allocation4], %s409
          %v411 = vld [vmem:[%s410] ss:$8 sm:$0x3]
          %v412 = vstv %s392
          %v413 = vmul.f32 %v402, %v412
          %v414 = vstv %s393
          %v415 = vmul.f32 %v411, %v414
          %v416 = vadd.f32 %v413, %v415
          %s417 = scalar_lea.vmem [#allocation2], %s366
          %v418 = vld [vmem:[%s417] sm:$0x1]
          %v419 = vlaneseq
          %v420 = vshrl.u32 %v419, 7
          %v421 = vsub.s32 0, %v420
          %v422 = vrot.slane %v418, %v421
          %v423 = vsub.f32 %v333, %v422
          %v424 = vsub.f32 %v334, %v422
          %v425 = vsub.f32 %v335, %v422
          %v426 = vsub.f32 %v336, %v422
          %v427 = vsub.f32 %v337, %v422
          %v428 = vsub.f32 %v338, %v422
          %v429 = vsub.f32 %v339, %v422
          %v430 = vsub.f32 %v340, %v422
          %v431 = vsub.f32 %v341, %v422
          %v432 = vsub.f32 %v342, %v422
          %v433 = vsub.f32 %v343, %v422
          %v434 = vsub.f32 %v344, %v422
          %v435 = vsub.f32 %v345, %v422
          %v436 = vsub.f32 %v346, %v422
          %v437 = vsub.f32 %v347, %v422
          %v438 = vsub.f32 %v348, %v422
          %v439 = vsub.f32 %v349, %v422
          %v440 = vsub.f32 %v350, %v422
          %v441 = vsub.f32 %v351, %v422
          %v442 = vsub.f32 %v352, %v422
          %v443 = vsub.f32 %v353, %v422
          %v444 = vsub.f32 %v354, %v422
          %v445 = vsub.f32 %v355, %v422
          %v446 = vsub.f32 %v356, %v422
          %v447 = vsub.f32 %v357, %v422
          %v448 = vsub.f32 %v358, %v422
          %v449 = vsub.f32 %v359, %v422
          %v450 = vsub.f32 %v360, %v422
          %v451 = vsub.f32 %v361, %v422
          %v452 = vsub.f32 %v362, %v422
          %v453 = vsub.f32 %v363, %v422
          %v454 = vsub.f32 %v364, %v422
          %v455 = vand.u32 2147483647, %v423
          %v456 = vand.u32 2147483647, %v424
          %v457 = vand.u32 2147483647, %v425
          %v458 = vand.u32 2147483647, %v426
          %v459 = vand.u32 2147483647, %v427
          %v460 = vand.u32 2147483647, %v428
          %v461 = vand.u32 2147483647, %v429
          %v462 = vand.u32 2147483647, %v430
          %v463 = vand.u32 2147483647, %v431
          %v464 = vand.u32 2147483647, %v432
          %v465 = vand.u32 2147483647, %v433
          %v466 = vand.u32 2147483647, %v434
          %v467 = vand.u32 2147483647, %v435
          %v468 = vand.u32 2147483647, %v436
          %v469 = vand.u32 2147483647, %v437
          %v470 = vand.u32 2147483647, %v438
          %v471 = vand.u32 2147483647, %v439
          %v472 = vand.u32 2147483647, %v440
          %v473 = vand.u32 2147483647, %v441
          %v474 = vand.u32 2147483647, %v442
          %v475 = vand.u32 2147483647, %v443
          %v476 = vand.u32 2147483647, %v444
          %v477 = vand.u32 2147483647, %v445
          %v478 = vand.u32 2147483647, %v446
          %v479 = vand.u32 2147483647, %v447
          %v480 = vand.u32 2147483647, %v448
          %v481 = vand.u32 2147483647, %v449
          %v482 = vand.u32 2147483647, %v450
          %v483 = vand.u32 2147483647, %v451
          %v484 = vand.u32 2147483647, %v452
          %v485 = vand.u32 2147483647, %v453
          %v486 = vand.u32 2147483647, %v454
          %v487 = vsub.f32 1.0, %v455
          %v488 = vsub.f32 1.0, %v456
          %v489 = vsub.f32 1.0, %v457
          %v490 = vsub.f32 1.0, %v458
          %v491 = vsub.f32 1.0, %v459
          %v492 = vsub.f32 1.0, %v460
          %v493 = vsub.f32 1.0, %v461
          %v494 = vsub.f32 1.0, %v462
          %v495 = vsub.f32 1.0, %v463
          %v496 = vsub.f32 1.0, %v464
          %v497 = vsub.f32 1.0, %v465
          %v498 = vsub.f32 1.0, %v466
          %v499 = vsub.f32 1.0, %v467
          %v500 = vsub.f32 1.0, %v468
          %v501 = vsub.f32 1.0, %v469
          %v502 = vsub.f32 1.0, %v470
          %v503 = vsub.f32 1.0, %v471
          %v504 = vsub.f32 1.0, %v472
          %v505 = vsub.f32 1.0, %v473
          %v506 = vsub.f32 1.0, %v474
          %v507 = vsub.f32 1.0, %v475
          %v508 = vsub.f32 1.0, %v476
          %v509 = vsub.f32 1.0, %v477
          %v510 = vsub.f32 1.0, %v478
          %v511 = vsub.f32 1.0, %v479
          %v512 = vsub.f32 1.0, %v480
          %v513 = vsub.f32 1.0, %v481
          %v514 = vsub.f32 1.0, %v482
          %v515 = vsub.f32 1.0, %v483
          %v516 = vsub.f32 1.0, %v484
          %v517 = vsub.f32 1.0, %v485
          %v518 = vsub.f32 1.0, %v486
          %v519 = vmax.f32 %v487, 0.0
          %v520 = vmax.f32 %v488, 0.0
          %v521 = vmax.f32 %v489, 0.0
          %v522 = vmax.f32 %v490, 0.0
          %v523 = vmax.f32 %v491, 0.0
          %v524 = vmax.f32 %v492, 0.0
          %v525 = vmax.f32 %v493, 0.0
          %v526 = vmax.f32 %v494, 0.0
          %v527 = vmax.f32 %v495, 0.0
          %v528 = vmax.f32 %v496, 0.0
          %v529 = vmax.f32 %v497, 0.0
          %v530 = vmax.f32 %v498, 0.0
          %v531 = vmax.f32 %v499, 0.0
          %v532 = vmax.f32 %v500, 0.0
          %v533 = vmax.f32 %v501, 0.0
          %v534 = vmax.f32 %v502, 0.0
          %v535 = vmax.f32 %v503, 0.0
          %v536 = vmax.f32 %v504, 0.0
          %v537 = vmax.f32 %v505, 0.0
          %v538 = vmax.f32 %v506, 0.0
          %v539 = vmax.f32 %v507, 0.0
          %v540 = vmax.f32 %v508, 0.0
          %v541 = vmax.f32 %v509, 0.0
          %v542 = vmax.f32 %v510, 0.0
          %v543 = vmax.f32 %v511, 0.0
          %v544 = vmax.f32 %v512, 0.0
          %v545 = vmax.f32 %v513, 0.0
          %v546 = vmax.f32 %v514, 0.0
          %v547 = vmax.f32 %v515, 0.0
          %v548 = vmax.f32 %v516, 0.0
          %v549 = vmax.f32 %v517, 0.0
          %v550 = vmax.f32 %v518, 0.0
          %v552 = vlaneseq
          %v553 = vshrl.u32 %v552, 7
          %v554 = vsub.s32 0, %v553
          %v555 = vrot.slane %v416, %v554
          %v556 = vlaneseq
          %v557 = vshrl.u32 %v556, 7
          %v558 = vsub.s32 1, %v557
          %v559 = vrot.slane %v416, %v558
          %562 = vmatprep.subr.mxu0 0.0
          %v563 = vand.u32 %v519, 4294901760
          %564 = vmatpush1.msra.mxu0 %v563
          %565 = vmatprep.subr.mxu0 0.0
          %v566 = vand.u32 %v520, 4294901760
          %567 = vmatpush1.msra.mxu0 %v566
          %568 = vmatprep.subr.mxu0 0.0
          %v569 = vand.u32 %v521, 4294901760
          %570 = vmatpush1.msra.mxu0 %v569
          %571 = vmatprep.subr.mxu0 0.0
          %v572 = vand.u32 %v522, 4294901760
          %573 = vmatpush1.msra.mxu0 %v572
          %574 = vmatprep.subr.mxu0 0.0
          %v575 = vand.u32 %v523, 4294901760
          %576 = vmatpush1.msra.mxu0 %v575
          %577 = vmatprep.subr.mxu0 0.0
          %v578 = vand.u32 %v524, 4294901760
          %579 = vmatpush1.msra.mxu0 %v578
          %580 = vmatprep.subr.mxu0 0.0
          %v581 = vand.u32 %v525, 4294901760
          %582 = vmatpush1.msra.mxu0 %v581
          %583 = vmatprep.subr.mxu0 0.0
          %v584 = vand.u32 %v526, 4294901760
          %585 = vmatpush1.msra.mxu0 %v584
          %586 = vmatprep.subr.mxu0 0.0
          %v587 = vand.u32 %v527, 4294901760
          %588 = vmatpush1.msra.mxu0 %v587
          %589 = vmatprep.subr.mxu0 0.0
          %v590 = vand.u32 %v528, 4294901760
          %591 = vmatpush1.msra.mxu0 %v590
          %592 = vmatprep.subr.mxu0 0.0
          %v593 = vand.u32 %v529, 4294901760
          %594 = vmatpush1.msra.mxu0 %v593
          %595 = vmatprep.subr.mxu0 0.0
          %v596 = vand.u32 %v530, 4294901760
          %597 = vmatpush1.msra.mxu0 %v596
          %598 = vmatprep.subr.mxu0 0.0
          %v599 = vand.u32 %v531, 4294901760
          %600 = vmatpush1.msra.mxu0 %v599
          %601 = vmatprep.subr.mxu0 0.0
          %v602 = vand.u32 %v532, 4294901760
          %603 = vmatpush1.msra.mxu0 %v602
          %604 = vmatprep.subr.mxu0 0.0
          %v605 = vand.u32 %v533, 4294901760
          %606 = vmatpush1.msra.mxu0 %v605
          %607 = vmatprep.subr.mxu0 0.0
          %v608 = vand.u32 %v534, 4294901760
          %609 = vmatpush1.msra.mxu0 %v608
          %610 = vmatprep.subr.mxu0 0.0
          %v611 = vand.u32 %v535, 4294901760
          %612 = vmatpush1.msra.mxu0 %v611
          %613 = vmatprep.subr.mxu0 0.0
          %v614 = vand.u32 %v536, 4294901760
          %615 = vmatpush1.msra.mxu0 %v614
          %616 = vmatprep.subr.mxu0 0.0
          %v617 = vand.u32 %v537, 4294901760
          %618 = vmatpush1.msra.mxu0 %v617
          %619 = vmatprep.subr.mxu0 0.0
          %v620 = vand.u32 %v538, 4294901760
          %621 = vmatpush1.msra.mxu0 %v620
          %622 = vmatprep.subr.mxu0 0.0
          %v623 = vand.u32 %v539, 4294901760
          %624 = vmatpush1.msra.mxu0 %v623
          %625 = vmatprep.subr.mxu0 0.0
          %v626 = vand.u32 %v540, 4294901760
          %627 = vmatpush1.msra.mxu0 %v626
          %628 = vmatprep.subr.mxu0 0.0
          %v629 = vand.u32 %v541, 4294901760
          %630 = vmatpush1.msra.mxu0 %v629
          %631 = vmatprep.subr.mxu0 0.0
          %v632 = vand.u32 %v542, 4294901760
          %633 = vmatpush1.msra.mxu0 %v632
          %634 = vmatprep.subr.mxu0 0.0
          %v635 = vand.u32 %v543, 4294901760
          %636 = vmatpush1.msra.mxu0 %v635
          %637 = vmatprep.subr.mxu0 0.0
          %v638 = vand.u32 %v544, 4294901760
          %639 = vmatpush1.msra.mxu0 %v638
          %640 = vmatprep.subr.mxu0 0.0
          %v641 = vand.u32 %v545, 4294901760
          %642 = vmatpush1.msra.mxu0 %v641
          %643 = vmatprep.subr.mxu0 0.0
          %v644 = vand.u32 %v546, 4294901760
          %645 = vmatpush1.msra.mxu0 %v644
          %646 = vmatprep.subr.mxu0 0.0
          %v647 = vand.u32 %v547, 4294901760
          %648 = vmatpush1.msra.mxu0 %v647
          %649 = vmatprep.subr.mxu0 0.0
          %v650 = vand.u32 %v548, 4294901760
          %651 = vmatpush1.msra.mxu0 %v650
          %652 = vmatprep.subr.mxu0 0.0
          %v653 = vand.u32 %v549, 4294901760
          %654 = vmatpush1.msra.mxu0 %v653
          %655 = vmatprep.subr.mxu0 0.0
          %v656 = vand.u32 %v550, 4294901760
          %657 = vmatpush1.msra.mxu0 %v656
          %v658 = vand.u32 %v559, 4294901760
          %v659 = vsub.f32 %v559, %v658
          %v660 = vand.u32 %v659, 4294901760
          %v661 = vsub.f32 %v659, %v660
          %v662 = vand.u32 %v661, 4294901760
          %663 = vmatprep.mubr.f32.mxu0 %v662
          %v664 = vand.u32 %v555, 4294901760
          %v665 = vsub.f32 %v555, %v664
          %v666 = vand.u32 %v665, 4294901760
          %v667 = vsub.f32 %v665, %v666
          %v668 = vand.u32 %v667, 4294901760
          %669 = vmatmul.mubr.f32.gmra.mrb[0].mxu0 %v668
          %v670 = vpop.f32.mrb[0].mxu0
          %v671 = vadd.f32 0.0, %v670
          %v672 = vpop.f32.mrb[0].mxu0
          %673 = vdwg.mxu0
          %674 = vmatprep.subr.mxu0 0.0
          %v675 = vand.u32 %v519, 4294901760
          %v676 = vsub.f32 %v519, %v675
          %v677 = vand.u32 %v676, 4294901760
          %v678 = vsub.f32 %v676, %v677
          %v679 = vand.u32 %v678, 4294901760
          %680 = vmatpush1.msra.mxu0 %v679
          %681 = vmatprep.subr.mxu0 0.0
          %v682 = vand.u32 %v520, 4294901760
          %v683 = vsub.f32 %v520, %v682
          %v684 = vand.u32 %v683, 4294901760
          %v685 = vsub.f32 %v683, %v684
          %v686 = vand.u32 %v685, 4294901760
          %687 = vmatpush1.msra.mxu0 %v686
          %688 = vmatprep.subr.mxu0 0.0
          %v689 = vand.u32 %v521, 4294901760
          %v690 = vsub.f32 %v521, %v689
          %v691 = vand.u32 %v690, 4294901760
          %v692 = vsub.f32 %v690, %v691
          %v693 = vand.u32 %v692, 4294901760
          %694 = vmatpush1.msra.mxu0 %v693
          %695 = vmatprep.subr.mxu0 0.0
          %v696 = vand.u32 %v522, 4294901760
          %v697 = vsub.f32 %v522, %v696
          %v698 = vand.u32 %v697, 4294901760
          %v699 = vsub.f32 %v697, %v698
          %v700 = vand.u32 %v699, 4294901760
          %701 = vmatpush1.msra.mxu0 %v700
          %702 = vmatprep.subr.mxu0 0.0
          %v703 = vand.u32 %v523, 4294901760
          %v704 = vsub.f32 %v523, %v703
          %v705 = vand.u32 %v704, 4294901760
          %v706 = vsub.f32 %v704, %v705
          %v707 = vand.u32 %v706, 4294901760
          %708 = vmatpush1.msra.mxu0 %v707
          %709 = vmatprep.subr.mxu0 0.0
          %v710 = vand.u32 %v524, 4294901760
          %v711 = vsub.f32 %v524, %v710
          %v712 = vand.u32 %v711, 4294901760
          %v713 = vsub.f32 %v711, %v712
          %v714 = vand.u32 %v713, 4294901760
          %715 = vmatpush1.msra.mxu0 %v714
          %716 = vmatprep.subr.mxu0 0.0
          %v717 = vand.u32 %v525, 4294901760
          %v718 = vsub.f32 %v525, %v717
          %v719 = vand.u32 %v718, 4294901760
          %v720 = vsub.f32 %v718, %v719
          %v721 = vand.u32 %v720, 4294901760
          %722 = vmatpush1.msra.mxu0 %v721
          %723 = vmatprep.subr.mxu0 0.0
          %v724 = vand.u32 %v526, 4294901760
          %v725 = vsub.f32 %v526, %v724
          %v726 = vand.u32 %v725, 4294901760
          %v727 = vsub.f32 %v725, %v726
          %v728 = vand.u32 %v727, 4294901760
          %729 = vmatpush1.msra.mxu0 %v728
          %730 = vmatprep.subr.mxu0 0.0
          %v731 = vand.u32 %v527, 4294901760
          %v732 = vsub.f32 %v527, %v731
          %v733 = vand.u32 %v732, 4294901760
          %v734 = vsub.f32 %v732, %v733
          %v735 = vand.u32 %v734, 4294901760
          %736 = vmatpush1.msra.mxu0 %v735
          %737 = vmatprep.subr.mxu0 0.0
          %v738 = vand.u32 %v528, 4294901760
          %v739 = vsub.f32 %v528, %v738
          %v740 = vand.u32 %v739, 4294901760
          %v741 = vsub.f32 %v739, %v740
          %v742 = vand.u32 %v741, 4294901760
          %743 = vmatpush1.msra.mxu0 %v742
          %744 = vmatprep.subr.mxu0 0.0
          %v745 = vand.u32 %v529, 4294901760
          %v746 = vsub.f32 %v529, %v745
          %v747 = vand.u32 %v746, 4294901760
          %v748 = vsub.f32 %v746, %v747
          %v749 = vand.u32 %v748, 4294901760
          %750 = vmatpush1.msra.mxu0 %v749
          %751 = vmatprep.subr.mxu0 0.0
          %v752 = vand.u32 %v530, 4294901760
          %v753 = vsub.f32 %v530, %v752
          %v754 = vand.u32 %v753, 4294901760
          %v755 = vsub.f32 %v753, %v754
          %v756 = vand.u32 %v755, 4294901760
          %757 = vmatpush1.msra.mxu0 %v756
          %758 = vmatprep.subr.mxu0 0.0
          %v759 = vand.u32 %v531, 4294901760
          %v760 = vsub.f32 %v531, %v759
          %v761 = vand.u32 %v760, 4294901760
          %v762 = vsub.f32 %v760, %v761
          %v763 = vand.u32 %v762, 4294901760
          %764 = vmatpush1.msra.mxu0 %v763
          %765 = vmatprep.subr.mxu0 0.0
          %v766 = vand.u32 %v532, 4294901760
          %v767 = vsub.f32 %v532, %v766
          %v768 = vand.u32 %v767, 4294901760
          %v769 = vsub.f32 %v767, %v768
          %v770 = vand.u32 %v769, 4294901760
          %771 = vmatpush1.msra.mxu0 %v770
          %772 = vmatprep.subr.mxu0 0.0
          %v773 = vand.u32 %v533, 4294901760
          %v774 = vsub.f32 %v533, %v773
          %v775 = vand.u32 %v774, 4294901760
          %v776 = vsub.f32 %v774, %v775
          %v777 = vand.u32 %v776, 4294901760
          %778 = vmatpush1.msra.mxu0 %v777
          %779 = vmatprep.subr.mxu0 0.0
          %v780 = vand.u32 %v534, 4294901760
          %v781 = vsub.f32 %v534, %v780
          %v782 = vand.u32 %v781, 4294901760
          %v783 = vsub.f32 %v781, %v782
          %v784 = vand.u32 %v783, 4294901760
          %785 = vmatpush1.msra.mxu0 %v784
          %786 = vmatprep.subr.mxu0 0.0
          %v787 = vand.u32 %v535, 4294901760
          %v788 = vsub.f32 %v535, %v787
          %v789 = vand.u32 %v788, 4294901760
          %v790 = vsub.f32 %v788, %v789
          %v791 = vand.u32 %v790, 4294901760
          %792 = vmatpush1.msra.mxu0 %v791
          %793 = vmatprep.subr.mxu0 0.0
          %v794 = vand.u32 %v536, 4294901760
          %v795 = vsub.f32 %v536, %v794
          %v796 = vand.u32 %v795, 4294901760
          %v797 = vsub.f32 %v795, %v796
          %v798 = vand.u32 %v797, 4294901760
          %799 = vmatpush1.msra.mxu0 %v798
          %800 = vmatprep.subr.mxu0 0.0
          %v801 = vand.u32 %v537, 4294901760
          %v802 = vsub.f32 %v537, %v801
          %v803 = vand.u32 %v802, 4294901760
          %v804 = vsub.f32 %v802, %v803
          %v805 = vand.u32 %v804, 4294901760
          %806 = vmatpush1.msra.mxu0 %v805
          %807 = vmatprep.subr.mxu0 0.0
          %v808 = vand.u32 %v538, 4294901760
          %v809 = vsub.f32 %v538, %v808
          %v810 = vand.u32 %v809, 4294901760
          %v811 = vsub.f32 %v809, %v810
          %v812 = vand.u32 %v811, 4294901760
          %813 = vmatpush1.msra.mxu0 %v812
          %814 = vmatprep.subr.mxu0 0.0
          %v815 = vand.u32 %v539, 4294901760
          %v816 = vsub.f32 %v539, %v815
          %v817 = vand.u32 %v816, 4294901760
          %v818 = vsub.f32 %v816, %v817
          %v819 = vand.u32 %v818, 4294901760
          %820 = vmatpush1.msra.mxu0 %v819
          %821 = vmatprep.subr.mxu0 0.0
          %v822 = vand.u32 %v540, 4294901760
          %v823 = vsub.f32 %v540, %v822
          %v824 = vand.u32 %v823, 4294901760
          %v825 = vsub.f32 %v823, %v824
          %v826 = vand.u32 %v825, 4294901760
          %827 = vmatpush1.msra.mxu0 %v826
          %828 = vmatprep.subr.mxu0 0.0
          %v829 = vand.u32 %v541, 4294901760
          %v830 = vsub.f32 %v541, %v829
          %v831 = vand.u32 %v830, 4294901760
          %v832 = vsub.f32 %v830, %v831
          %v833 = vand.u32 %v832, 4294901760
          %834 = vmatpush1.msra.mxu0 %v833
          %835 = vmatprep.subr.mxu0 0.0
          %v836 = vand.u32 %v542, 4294901760
          %v837 = vsub.f32 %v542, %v836
          %v838 = vand.u32 %v837, 4294901760
          %v839 = vsub.f32 %v837, %v838
          %v840 = vand.u32 %v839, 4294901760
          %841 = vmatpush1.msra.mxu0 %v840
          %842 = vmatprep.subr.mxu0 0.0
          %v843 = vand.u32 %v543, 4294901760
          %v844 = vsub.f32 %v543, %v843
          %v845 = vand.u32 %v844, 4294901760
          %v846 = vsub.f32 %v844, %v845
          %v847 = vand.u32 %v846, 4294901760
          %848 = vmatpush1.msra.mxu0 %v847
          %849 = vmatprep.subr.mxu0 0.0
          %v850 = vand.u32 %v544, 4294901760
          %v851 = vsub.f32 %v544, %v850
          %v852 = vand.u32 %v851, 4294901760
          %v853 = vsub.f32 %v851, %v852
          %v854 = vand.u32 %v853, 4294901760
          %855 = vmatpush1.msra.mxu0 %v854
          %856 = vmatprep.subr.mxu0 0.0
          %v857 = vand.u32 %v545, 4294901760
          %v858 = vsub.f32 %v545, %v857
          %v859 = vand.u32 %v858, 4294901760
          %v860 = vsub.f32 %v858, %v859
          %v861 = vand.u32 %v860, 4294901760
          %862 = vmatpush1.msra.mxu0 %v861
          %863 = vmatprep.subr.mxu0 0.0
          %v864 = vand.u32 %v546, 4294901760
          %v865 = vsub.f32 %v546, %v864
          %v866 = vand.u32 %v865, 4294901760
          %v867 = vsub.f32 %v865, %v866
          %v868 = vand.u32 %v867, 4294901760
          %869 = vmatpush1.msra.mxu0 %v868
          %870 = vmatprep.subr.mxu0 0.0
          %v871 = vand.u32 %v547, 4294901760
          %v872 = vsub.f32 %v547, %v871
          %v873 = vand.u32 %v872, 4294901760
          %v874 = vsub.f32 %v872, %v873
          %v875 = vand.u32 %v874, 4294901760
          %876 = vmatpush1.msra.mxu0 %v875
          %877 = vmatprep.subr.mxu0 0.0
          %v878 = vand.u32 %v548, 4294901760
          %v879 = vsub.f32 %v548, %v878
          %v880 = vand.u32 %v879, 4294901760
          %v881 = vsub.f32 %v879, %v880
          %v882 = vand.u32 %v881, 4294901760
          %883 = vmatpush1.msra.mxu0 %v882
          %884 = vmatprep.subr.mxu0 0.0
          %v885 = vand.u32 %v549, 4294901760
          %v886 = vsub.f32 %v549, %v885
          %v887 = vand.u32 %v886, 4294901760
          %v888 = vsub.f32 %v886, %v887
          %v889 = vand.u32 %v888, 4294901760
          %890 = vmatpush1.msra.mxu0 %v889
          %891 = vmatprep.subr.mxu0 0.0
          %v892 = vand.u32 %v550, 4294901760
          %v893 = vsub.f32 %v550, %v892
          %v894 = vand.u32 %v893, 4294901760
          %v895 = vsub.f32 %v893, %v894
          %v896 = vand.u32 %v895, 4294901760
          %897 = vmatpush1.msra.mxu0 %v896
          %v898 = vand.u32 %v559, 4294901760
          %899 = vmatprep.mubr.f32.mxu0 %v898
          %v900 = vand.u32 %v555, 4294901760
          %901 = vmatmul.mubr.f32.gmra.mrb[0].mxu0 %v900
          %v902 = vpop.f32.mrb[0].mxu0
          %v903 = vadd.f32 %v671, %v902
          %v904 = vpop.f32.mrb[0].mxu0
          %905 = vdwg.mxu0
          %906 = vmatprep.subr.mxu0 0.0
          %v907 = vand.u32 %v519, 4294901760
          %v908 = vsub.f32 %v519, %v907
          %909 = vmatpush1.msra.mxu0 %v908
          %910 = vmatprep.subr.mxu0 0.0
          %v911 = vand.u32 %v520, 4294901760
          %v912 = vsub.f32 %v520, %v911
          %913 = vmatpush1.msra.mxu0 %v912
          %914 = vmatprep.subr.mxu0 0.0
          %v915 = vand.u32 %v521, 4294901760
          %v916 = vsub.f32 %v521, %v915
          %917 = vmatpush1.msra.mxu0 %v916
          %918 = vmatprep.subr.mxu0 0.0
          %v919 = vand.u32 %v522, 4294901760
          %v920 = vsub.f32 %v522, %v919
          %921 = vmatpush1.msra.mxu0 %v920
          %922 = vmatprep.subr.mxu0 0.0
          %v923 = vand.u32 %v523, 4294901760
          %v924 = vsub.f32 %v523, %v923
          %925 = vmatpush1.msra.mxu0 %v924
          %926 = vmatprep.subr.mxu0 0.0
          %v927 = vand.u32 %v524, 4294901760
          %v928 = vsub.f32 %v524, %v927
          %929 = vmatpush1.msra.mxu0 %v928
          %930 = vmatprep.subr.mxu0 0.0
          %v931 = vand.u32 %v525, 4294901760
          %v932 = vsub.f32 %v525, %v931
          %933 = vmatpush1.msra.mxu0 %v932
          %934 = vmatprep.subr.mxu0 0.0
          %v935 = vand.u32 %v526, 4294901760
          %v936 = vsub.f32 %v526, %v935
          %937 = vmatpush1.msra.mxu0 %v936
          %938 = vmatprep.subr.mxu0 0.0
          %v939 = vand.u32 %v527, 4294901760
          %v940 = vsub.f32 %v527, %v939
          %941 = vmatpush1.msra.mxu0 %v940
          %942 = vmatprep.subr.mxu0 0.0
          %v943 = vand.u32 %v528, 4294901760
          %v944 = vsub.f32 %v528, %v943
          %945 = vmatpush1.msra.mxu0 %v944
          %946 = vmatprep.subr.mxu0 0.0
          %v947 = vand.u32 %v529, 4294901760
          %v948 = vsub.f32 %v529, %v947
          %949 = vmatpush1.msra.mxu0 %v948
          %950 = vmatprep.subr.mxu0 0.0
          %v951 = vand.u32 %v530, 4294901760
          %v952 = vsub.f32 %v530, %v951
          %953 = vmatpush1.msra.mxu0 %v952
          %954 = vmatprep.subr.mxu0 0.0
          %v955 = vand.u32 %v531, 4294901760
          %v956 = vsub.f32 %v531, %v955
          %957 = vmatpush1.msra.mxu0 %v956
          %958 = vmatprep.subr.mxu0 0.0
          %v959 = vand.u32 %v532, 4294901760
          %v960 = vsub.f32 %v532, %v959
          %961 = vmatpush1.msra.mxu0 %v960
          %962 = vmatprep.subr.mxu0 0.0
          %v963 = vand.u32 %v533, 4294901760
          %v964 = vsub.f32 %v533, %v963
          %965 = vmatpush1.msra.mxu0 %v964
          %966 = vmatprep.subr.mxu0 0.0
          %v967 = vand.u32 %v534, 4294901760
          %v968 = vsub.f32 %v534, %v967
          %969 = vmatpush1.msra.mxu0 %v968
          %970 = vmatprep.subr.mxu0 0.0
          %v971 = vand.u32 %v535, 4294901760
          %v972 = vsub.f32 %v535, %v971
          %973 = vmatpush1.msra.mxu0 %v972
          %974 = vmatprep.subr.mxu0 0.0
          %v975 = vand.u32 %v536, 4294901760
          %v976 = vsub.f32 %v536, %v975
          %977 = vmatpush1.msra.mxu0 %v976
          %978 = vmatprep.subr.mxu0 0.0
          %v979 = vand.u32 %v537, 4294901760
          %v980 = vsub.f32 %v537, %v979
          %981 = vmatpush1.msra.mxu0 %v980
          %982 = vmatprep.subr.mxu0 0.0
          %v983 = vand.u32 %v538, 4294901760
          %v984 = vsub.f32 %v538, %v983
          %985 = vmatpush1.msra.mxu0 %v984
          %986 = vmatprep.subr.mxu0 0.0
          %v987 = vand.u32 %v539, 4294901760
          %v988 = vsub.f32 %v539, %v987
          %989 = vmatpush1.msra.mxu0 %v988
          %990 = vmatprep.subr.mxu0 0.0
          %v991 = vand.u32 %v540, 4294901760
          %v992 = vsub.f32 %v540, %v991
          %993 = vmatpush1.msra.mxu0 %v992
          %994 = vmatprep.subr.mxu0 0.0
          %v995 = vand.u32 %v541, 4294901760
          %v996 = vsub.f32 %v541, %v995
          %997 = vmatpush1.msra.mxu0 %v996
          %998 = vmatprep.subr.mxu0 0.0
          %v999 = vand.u32 %v542, 4294901760
          %v1000 = vsub.f32 %v542, %v999
          %1001 = vmatpush1.msra.mxu0 %v1000
          %1002 = vmatprep.subr.mxu0 0.0
          %v1003 = vand.u32 %v543, 4294901760
          %v1004 = vsub.f32 %v543, %v1003
          %1005 = vmatpush1.msra.mxu0 %v1004
          %1006 = vmatprep.subr.mxu0 0.0
          %v1007 = vand.u32 %v544, 4294901760
          %v1008 = vsub.f32 %v544, %v1007
          %1009 = vmatpush1.msra.mxu0 %v1008
          %1010 = vmatprep.subr.mxu0 0.0
          %v1011 = vand.u32 %v545, 4294901760
          %v1012 = vsub.f32 %v545, %v1011
          %1013 = vmatpush1.msra.mxu0 %v1012
          %1014 = vmatprep.subr.mxu0 0.0
          %v1015 = vand.u32 %v546, 4294901760
          %v1016 = vsub.f32 %v546, %v1015
          %1017 = vmatpush1.msra.mxu0 %v1016
          %1018 = vmatprep.subr.mxu0 0.0
          %v1019 = vand.u32 %v547, 4294901760
          %v1020 = vsub.f32 %v547, %v1019
          %1021 = vmatpush1.msra.mxu0 %v1020
          %1022 = vmatprep.subr.mxu0 0.0
          %v1023 = vand.u32 %v548, 4294901760
          %v1024 = vsub.f32 %v548, %v1023
          %1025 = vmatpush1.msra.mxu0 %v1024
          %1026 = vmatprep.subr.mxu0 0.0
          %v1027 = vand.u32 %v549, 4294901760
          %v1028 = vsub.f32 %v549, %v1027
          %1029 = vmatpush1.msra.mxu0 %v1028
          %1030 = vmatprep.subr.mxu0 0.0
          %v1031 = vand.u32 %v550, 4294901760
          %v1032 = vsub.f32 %v550, %v1031
          %1033 = vmatpush1.msra.mxu0 %v1032
          %v1034 = vand.u32 %v559, 4294901760
          %v1035 = vsub.f32 %v559, %v1034
          %1036 = vmatprep.mubr.f32.mxu0 %v1035
          %v1037 = vand.u32 %v555, 4294901760
          %v1038 = vsub.f32 %v555, %v1037
          %1039 = vmatmul.mubr.f32.gmra.mrb[0].mxu0 %v1038
          %v1040 = vpop.f32.mrb[0].mxu0
          %v1041 = vadd.f32 %v903, %v1040
          %v1042 = vpop.f32.mrb[0].mxu0
          %1043 = vdwg.mxu0
          %1044 = vmatprep.subr.mxu0 0.0
          %v1045 = vand.u32 %v519, 4294901760
          %1046 = vmatpush1.msra.mxu0 %v1045
          %1047 = vmatprep.subr.mxu0 0.0
          %v1048 = vand.u32 %v520, 4294901760
          %1049 = vmatpush1.msra.mxu0 %v1048
          %1050 = vmatprep.subr.mxu0 0.0
          %v1051 = vand.u32 %v521, 4294901760
          %1052 = vmatpush1.msra.mxu0 %v1051
          %1053 = vmatprep.subr.mxu0 0.0
          %v1054 = vand.u32 %v522, 4294901760
          %1055 = vmatpush1.msra.mxu0 %v1054
          %1056 = vmatprep.subr.mxu0 0.0
          %v1057 = vand.u32 %v523, 4294901760
          %1058 = vmatpush1.msra.mxu0 %v1057
          %1059 = vmatprep.subr.mxu0 0.0
          %v1060 = vand.u32 %v524, 4294901760
          %1061 = vmatpush1.msra.mxu0 %v1060
          %1062 = vmatprep.subr.mxu0 0.0
          %v1063 = vand.u32 %v525, 4294901760
          %1064 = vmatpush1.msra.mxu0 %v1063
          %1065 = vmatprep.subr.mxu0 0.0
          %v1066 = vand.u32 %v526, 4294901760
          %1067 = vmatpush1.msra.mxu0 %v1066
          %1068 = vmatprep.subr.mxu0 0.0
          %v1069 = vand.u32 %v527, 4294901760
          %1070 = vmatpush1.msra.mxu0 %v1069
          %1071 = vmatprep.subr.mxu0 0.0
          %v1072 = vand.u32 %v528, 4294901760
          %1073 = vmatpush1.msra.mxu0 %v1072
          %1074 = vmatprep.subr.mxu0 0.0
          %v1075 = vand.u32 %v529, 4294901760
          %1076 = vmatpush1.msra.mxu0 %v1075
          %1077 = vmatprep.subr.mxu0 0.0
          %v1078 = vand.u32 %v530, 4294901760
          %1079 = vmatpush1.msra.mxu0 %v1078
          %1080 = vmatprep.subr.mxu0 0.0
          %v1081 = vand.u32 %v531, 4294901760
          %1082 = vmatpush1.msra.mxu0 %v1081
          %1083 = vmatprep.subr.mxu0 0.0
          %v1084 = vand.u32 %v532, 4294901760
          %1085 = vmatpush1.msra.mxu0 %v1084
          %1086 = vmatprep.subr.mxu0 0.0
          %v1087 = vand.u32 %v533, 4294901760
          %1088 = vmatpush1.msra.mxu0 %v1087
          %1089 = vmatprep.subr.mxu0 0.0
          %v1090 = vand.u32 %v534, 4294901760
          %1091 = vmatpush1.msra.mxu0 %v1090
          %1092 = vmatprep.subr.mxu0 0.0
          %v1093 = vand.u32 %v535, 4294901760
          %1094 = vmatpush1.msra.mxu0 %v1093
          %1095 = vmatprep.subr.mxu0 0.0
          %v1096 = vand.u32 %v536, 4294901760
          %1097 = vmatpush1.msra.mxu0 %v1096
          %1098 = vmatprep.subr.mxu0 0.0
          %v1099 = vand.u32 %v537, 4294901760
          %1100 = vmatpush1.msra.mxu0 %v1099
          %1101 = vmatprep.subr.mxu0 0.0
          %v1102 = vand.u32 %v538, 4294901760
          %1103 = vmatpush1.msra.mxu0 %v1102
          %1104 = vmatprep.subr.mxu0 0.0
          %v1105 = vand.u32 %v539, 4294901760
          %1106 = vmatpush1.msra.mxu0 %v1105
          %1107 = vmatprep.subr.mxu0 0.0
          %v1108 = vand.u32 %v540, 4294901760
          %1109 = vmatpush1.msra.mxu0 %v1108
          %1110 = vmatprep.subr.mxu0 0.0
          %v1111 = vand.u32 %v541, 4294901760
          %1112 = vmatpush1.msra.mxu0 %v1111
          %1113 = vmatprep.subr.mxu0 0.0
          %v1114 = vand.u32 %v542, 4294901760
          %1115 = vmatpush1.msra.mxu0 %v1114
          %1116 = vmatprep.subr.mxu0 0.0
          %v1117 = vand.u32 %v543, 4294901760
          %1118 = vmatpush1.msra.mxu0 %v1117
          %1119 = vmatprep.subr.mxu0 0.0
          %v1120 = vand.u32 %v544, 4294901760
          %1121 = vmatpush1.msra.mxu0 %v1120
          %1122 = vmatprep.subr.mxu0 0.0
          %v1123 = vand.u32 %v545, 4294901760
          %1124 = vmatpush1.msra.mxu0 %v1123
          %1125 = vmatprep.subr.mxu0 0.0
          %v1126 = vand.u32 %v546, 4294901760
          %1127 = vmatpush1.msra.mxu0 %v1126
          %1128 = vmatprep.subr.mxu0 0.0
          %v1129 = vand.u32 %v547, 4294901760
          %1130 = vmatpush1.msra.mxu0 %v1129
          %1131 = vmatprep.subr.mxu0 0.0
          %v1132 = vand.u32 %v548, 4294901760
          %1133 = vmatpush1.msra.mxu0 %v1132
          %1134 = vmatprep.subr.mxu0 0.0
          %v1135 = vand.u32 %v549, 4294901760
          %1136 = vmatpush1.msra.mxu0 %v1135
          %1137 = vmatprep.subr.mxu0 0.0
          %v1138 = vand.u32 %v550, 4294901760
          %1139 = vmatpush1.msra.mxu0 %v1138
          %v1140 = vand.u32 %v559, 4294901760
          %v1141 = vsub.f32 %v559, %v1140
          %v1142 = vand.u32 %v1141, 4294901760
          %1143 = vmatprep.mubr.f32.mxu0 %v1142
          %v1144 = vand.u32 %v555, 4294901760
          %v1145 = vsub.f32 %v555, %v1144
          %v1146 = vand.u32 %v1145, 4294901760
          %1147 = vmatmul.mubr.f32.gmra.mrb[0].mxu0 %v1146
          %v1148 = vpop.f32.mrb[0].mxu0
          %v1149 = vadd.f32 %v1041, %v1148
          %v1150 = vpop.f32.mrb[0].mxu0
          %1151 = vdwg.mxu0
          %1152 = vmatprep.subr.mxu0 0.0
          %v1153 = vand.u32 %v519, 4294901760
          %v1154 = vsub.f32 %v519, %v1153
          %v1155 = vand.u32 %v1154, 4294901760
          %1156 = vmatpush1.msra.mxu0 %v1155
          %1157 = vmatprep.subr.mxu0 0.0
          %v1158 = vand.u32 %v520, 4294901760
          %v1159 = vsub.f32 %v520, %v1158
          %v1160 = vand.u32 %v1159, 4294901760
          %1161 = vmatpush1.msra.mxu0 %v1160
          %1162 = vmatprep.subr.mxu0 0.0
          %v1163 = vand.u32 %v521, 4294901760
          %v1164 = vsub.f32 %v521, %v1163
          %v1165 = vand.u32 %v1164, 4294901760
          %1166 = vmatpush1.msra.mxu0 %v1165
          %1167 = vmatprep.subr.mxu0 0.0
          %v1168 = vand.u32 %v522, 4294901760
          %v1169 = vsub.f32 %v522, %v1168
          %v1170 = vand.u32 %v1169, 4294901760
          %1171 = vmatpush1.msra.mxu0 %v1170
          %1172 = vmatprep.subr.mxu0 0.0
          %v1173 = vand.u32 %v523, 4294901760
          %v1174 = vsub.f32 %v523, %v1173
          %v1175 = vand.u32 %v1174, 4294901760
          %1176 = vmatpush1.msra.mxu0 %v1175
          %1177 = vmatprep.subr.mxu0 0.0
          %v1178 = vand.u32 %v524, 4294901760
          %v1179 = vsub.f32 %v524, %v1178
          %v1180 = vand.u32 %v1179, 4294901760
          %1181 = vmatpush1.msra.mxu0 %v1180
          %1182 = vmatprep.subr.mxu0 0.0
          %v1183 = vand.u32 %v525, 4294901760
          %v1184 = vsub.f32 %v525, %v1183
          %v1185 = vand.u32 %v1184, 4294901760
          %1186 = vmatpush1.msra.mxu0 %v1185
          %1187 = vmatprep.subr.mxu0 0.0
          %v1188 = vand.u32 %v526, 4294901760
          %v1189 = vsub.f32 %v526, %v1188
          %v1190 = vand.u32 %v1189, 4294901760
          %1191 = vmatpush1.msra.mxu0 %v1190
          %1192 = vmatprep.subr.mxu0 0.0
          %v1193 = vand.u32 %v527, 4294901760
          %v1194 = vsub.f32 %v527, %v1193
          %v1195 = vand.u32 %v1194, 4294901760
          %1196 = vmatpush1.msra.mxu0 %v1195
          %1197 = vmatprep.subr.mxu0 0.0
          %v1198 = vand.u32 %v528, 4294901760
          %v1199 = vsub.f32 %v528, %v1198
          %v1200 = vand.u32 %v1199, 4294901760
          %1201 = vmatpush1.msra.mxu0 %v1200
          %1202 = vmatprep.subr.mxu0 0.0
          %v1203 = vand.u32 %v529, 4294901760
          %v1204 = vsub.f32 %v529, %v1203
          %v1205 = vand.u32 %v1204, 4294901760
          %1206 = vmatpush1.msra.mxu0 %v1205
          %1207 = vmatprep.subr.mxu0 0.0
          %v1208 = vand.u32 %v530, 4294901760
          %v1209 = vsub.f32 %v530, %v1208
          %v1210 = vand.u32 %v1209, 4294901760
          %1211 = vmatpush1.msra.mxu0 %v1210
          %1212 = vmatprep.subr.mxu0 0.0
          %v1213 = vand.u32 %v531, 4294901760
          %v1214 = vsub.f32 %v531, %v1213
          %v1215 = vand.u32 %v1214, 4294901760
          %1216 = vmatpush1.msra.mxu0 %v1215
          %1217 = vmatprep.subr.mxu0 0.0
          %v1218 = vand.u32 %v532, 4294901760
          %v1219 = vsub.f32 %v532, %v1218
          %v1220 = vand.u32 %v1219, 4294901760
          %1221 = vmatpush1.msra.mxu0 %v1220
          %1222 = vmatprep.subr.mxu0 0.0
          %v1223 = vand.u32 %v533, 4294901760
          %v1224 = vsub.f32 %v533, %v1223
          %v1225 = vand.u32 %v1224, 4294901760
          %1226 = vmatpush1.msra.mxu0 %v1225
          %1227 = vmatprep.subr.mxu0 0.0
          %v1228 = vand.u32 %v534, 4294901760
          %v1229 = vsub.f32 %v534, %v1228
          %v1230 = vand.u32 %v1229, 4294901760
          %1231 = vmatpush1.msra.mxu0 %v1230
          %1232 = vmatprep.subr.mxu0 0.0
          %v1233 = vand.u32 %v535, 4294901760
          %v1234 = vsub.f32 %v535, %v1233
          %v1235 = vand.u32 %v1234, 4294901760
          %1236 = vmatpush1.msra.mxu0 %v1235
          %1237 = vmatprep.subr.mxu0 0.0
          %v1238 = vand.u32 %v536, 4294901760
          %v1239 = vsub.f32 %v536, %v1238
          %v1240 = vand.u32 %v1239, 4294901760
          %1241 = vmatpush1.msra.mxu0 %v1240
          %1242 = vmatprep.subr.mxu0 0.0
          %v1243 = vand.u32 %v537, 4294901760
          %v1244 = vsub.f32 %v537, %v1243
          %v1245 = vand.u32 %v1244, 4294901760
          %1246 = vmatpush1.msra.mxu0 %v1245
          %1247 = vmatprep.subr.mxu0 0.0
          %v1248 = vand.u32 %v538, 4294901760
          %v1249 = vsub.f32 %v538, %v1248
          %v1250 = vand.u32 %v1249, 4294901760
          %1251 = vmatpush1.msra.mxu0 %v1250
          %1252 = vmatprep.subr.mxu0 0.0
          %v1253 = vand.u32 %v539, 4294901760
          %v1254 = vsub.f32 %v539, %v1253
          %v1255 = vand.u32 %v1254, 4294901760
          %1256 = vmatpush1.msra.mxu0 %v1255
          %1257 = vmatprep.subr.mxu0 0.0
          %v1258 = vand.u32 %v540, 4294901760
          %v1259 = vsub.f32 %v540, %v1258
          %v1260 = vand.u32 %v1259, 4294901760
          %1261 = vmatpush1.msra.mxu0 %v1260
          %1262 = vmatprep.subr.mxu0 0.0
          %v1263 = vand.u32 %v541, 4294901760
          %v1264 = vsub.f32 %v541, %v1263
          %v1265 = vand.u32 %v1264, 4294901760
          %1266 = vmatpush1.msra.mxu0 %v1265
          %1267 = vmatprep.subr.mxu0 0.0
          %v1268 = vand.u32 %v542, 4294901760
          %v1269 = vsub.f32 %v542, %v1268
          %v1270 = vand.u32 %v1269, 4294901760
          %1271 = vmatpush1.msra.mxu0 %v1270
          %1272 = vmatprep.subr.mxu0 0.0
          %v1273 = vand.u32 %v543, 4294901760
          %v1274 = vsub.f32 %v543, %v1273
          %v1275 = vand.u32 %v1274, 4294901760
          %1276 = vmatpush1.msra.mxu0 %v1275
          %1277 = vmatprep.subr.mxu0 0.0
          %v1278 = vand.u32 %v544, 4294901760
          %v1279 = vsub.f32 %v544, %v1278
          %v1280 = vand.u32 %v1279, 4294901760
          %1281 = vmatpush1.msra.mxu0 %v1280
          %1282 = vmatprep.subr.mxu0 0.0
          %v1283 = vand.u32 %v545, 4294901760
          %v1284 = vsub.f32 %v545, %v1283
          %v1285 = vand.u32 %v1284, 4294901760
          %1286 = vmatpush1.msra.mxu0 %v1285
          %1287 = vmatprep.subr.mxu0 0.0
          %v1288 = vand.u32 %v546, 4294901760
          %v1289 = vsub.f32 %v546, %v1288
          %v1290 = vand.u32 %v1289, 4294901760
          %1291 = vmatpush1.msra.mxu0 %v1290
          %1292 = vmatprep.subr.mxu0 0.0
          %v1293 = vand.u32 %v547, 4294901760
          %v1294 = vsub.f32 %v547, %v1293
          %v1295 = vand.u32 %v1294, 4294901760
          %1296 = vmatpush1.msra.mxu0 %v1295
          %1297 = vmatprep.subr.mxu0 0.0
          %v1298 = vand.u32 %v548, 4294901760
          %v1299 = vsub.f32 %v548, %v1298
          %v1300 = vand.u32 %v1299, 4294901760
          %1301 = vmatpush1.msra.mxu0 %v1300
          %1302 = vmatprep.subr.mxu0 0.0
          %v1303 = vand.u32 %v549, 4294901760
          %v1304 = vsub.f32 %v549, %v1303
          %v1305 = vand.u32 %v1304, 4294901760
          %1306 = vmatpush1.msra.mxu0 %v1305
          %1307 = vmatprep.subr.mxu0 0.0
          %v1308 = vand.u32 %v550, 4294901760
          %v1309 = vsub.f32 %v550, %v1308
          %v1310 = vand.u32 %v1309, 4294901760
          %1311 = vmatpush1.msra.mxu0 %v1310
          %v1312 = vand.u32 %v559, 4294901760
          %1313 = vmatprep.mubr.f32.mxu0 %v1312
          %v1314 = vand.u32 %v555, 4294901760
          %1315 = vmatmul.mubr.f32.gmra.mrb[0].mxu0 %v1314
          %v1316 = vpop.f32.mrb[0].mxu0
          %v1317 = vadd.f32 %v1149, %v1316
          %v1318 = vpop.f32.mrb[0].mxu0
          %1319 = vdwg.mxu0
          %1320 = vmatprep.subr.mxu0 0.0
          %v1321 = vand.u32 %v519, 4294901760
          %1322 = vmatpush1.msra.mxu0 %v1321
          %1323 = vmatprep.subr.mxu0 0.0
          %v1324 = vand.u32 %v520, 4294901760
          %1325 = vmatpush1.msra.mxu0 %v1324
          %1326 = vmatprep.subr.mxu0 0.0
          %v1327 = vand.u32 %v521, 4294901760
          %1328 = vmatpush1.msra.mxu0 %v1327
          %1329 = vmatprep.subr.mxu0 0.0
          %v1330 = vand.u32 %v522, 4294901760
          %1331 = vmatpush1.msra.mxu0 %v1330
          %1332 = vmatprep.subr.mxu0 0.0
          %v1333 = vand.u32 %v523, 4294901760
          %1334 = vmatpush1.msra.mxu0 %v1333
          %1335 = vmatprep.subr.mxu0 0.0
          %v1336 = vand.u32 %v524, 4294901760
          %1337 = vmatpush1.msra.mxu0 %v1336
          %1338 = vmatprep.subr.mxu0 0.0
          %v1339 = vand.u32 %v525, 4294901760
          %1340 = vmatpush1.msra.mxu0 %v1339
          %1341 = vmatprep.subr.mxu0 0.0
          %v1342 = vand.u32 %v526, 4294901760
          %1343 = vmatpush1.msra.mxu0 %v1342
          %1344 = vmatprep.subr.mxu0 0.0
          %v1345 = vand.u32 %v527, 4294901760
          %1346 = vmatpush1.msra.mxu0 %v1345
          %1347 = vmatprep.subr.mxu0 0.0
          %v1348 = vand.u32 %v528, 4294901760
          %1349 = vmatpush1.msra.mxu0 %v1348
          %1350 = vmatprep.subr.mxu0 0.0
          %v1351 = vand.u32 %v529, 4294901760
          %1352 = vmatpush1.msra.mxu0 %v1351
          %1353 = vmatprep.subr.mxu0 0.0
          %v1354 = vand.u32 %v530, 4294901760
          %1355 = vmatpush1.msra.mxu0 %v1354
          %1356 = vmatprep.subr.mxu0 0.0
          %v1357 = vand.u32 %v531, 4294901760
          %1358 = vmatpush1.msra.mxu0 %v1357
          %1359 = vmatprep.subr.mxu0 0.0
          %v1360 = vand.u32 %v532, 4294901760
          %1361 = vmatpush1.msra.mxu0 %v1360
          %1362 = vmatprep.subr.mxu0 0.0
          %v1363 = vand.u32 %v533, 4294901760
          %1364 = vmatpush1.msra.mxu0 %v1363
          %1365 = vmatprep.subr.mxu0 0.0
          %v1366 = vand.u32 %v534, 4294901760
          %1367 = vmatpush1.msra.mxu0 %v1366
          %1368 = vmatprep.subr.mxu0 0.0
          %v1369 = vand.u32 %v535, 4294901760
          %1370 = vmatpush1.msra.mxu0 %v1369
          %1371 = vmatprep.subr.mxu0 0.0
          %v1372 = vand.u32 %v536, 4294901760
          %1373 = vmatpush1.msra.mxu0 %v1372
          %1374 = vmatprep.subr.mxu0 0.0
          %v1375 = vand.u32 %v537, 4294901760
          %1376 = vmatpush1.msra.mxu0 %v1375
          %1377 = vmatprep.subr.mxu0 0.0
          %v1378 = vand.u32 %v538, 4294901760
          %1379 = vmatpush1.msra.mxu0 %v1378
          %1380 = vmatprep.subr.mxu0 0.0
          %v1381 = vand.u32 %v539, 4294901760
          %1382 = vmatpush1.msra.mxu0 %v1381
          %1383 = vmatprep.subr.mxu0 0.0
          %v1384 = vand.u32 %v540, 4294901760
          %1385 = vmatpush1.msra.mxu0 %v1384
          %1386 = vmatprep.subr.mxu0 0.0
          %v1387 = vand.u32 %v541, 4294901760
          %1388 = vmatpush1.msra.mxu0 %v1387
          %1389 = vmatprep.subr.mxu0 0.0
          %v1390 = vand.u32 %v542, 4294901760
          %1391 = vmatpush1.msra.mxu0 %v1390
          %1392 = vmatprep.subr.mxu0 0.0
          %v1393 = vand.u32 %v543, 4294901760
          %1394 = vmatpush1.msra.mxu0 %v1393
          %1395 = vmatprep.subr.mxu0 0.0
          %v1396 = vand.u32 %v544, 4294901760
          %1397 = vmatpush1.msra.mxu0 %v1396
          %1398 = vmatprep.subr.mxu0 0.0
          %v1399 = vand.u32 %v545, 4294901760
          %1400 = vmatpush1.msra.mxu0 %v1399
          %1401 = vmatprep.subr.mxu0 0.0
          %v1402 = vand.u32 %v546, 4294901760
          %1403 = vmatpush1.msra.mxu0 %v1402
          %1404 = vmatprep.subr.mxu0 0.0
          %v1405 = vand.u32 %v547, 4294901760
          %1406 = vmatpush1.msra.mxu0 %v1405
          %1407 = vmatprep.subr.mxu0 0.0
          %v1408 = vand.u32 %v548, 4294901760
          %1409 = vmatpush1.msra.mxu0 %v1408
          %1410 = vmatprep.subr.mxu0 0.0
          %v1411 = vand.u32 %v549, 4294901760
          %1412 = vmatpush1.msra.mxu0 %v1411
          %1413 = vmatprep.subr.mxu0 0.0
          %v1414 = vand.u32 %v550, 4294901760
          %1415 = vmatpush1.msra.mxu0 %v1414
          %v1416 = vand.u32 %v559, 4294901760
          %1417 = vmatprep.mubr.f32.mxu0 %v1416
          %v1418 = vand.u32 %v555, 4294901760
          %1419 = vmatmul.mubr.f32.gmra.mrb[0].mxu0 %v1418
          %v1420 = vpop.f32.mrb[0].mxu0
          %v1421 = vadd.f32 %v1317, %v1420
          %v1422 = vpop.f32.mrb[0].mxu0
          %1423 = vdwg.mxu0
          %s1424 = scalar_lea.vmem [#allocation3], %s366
          %1425 = vst [vmem:[%s1424] sm:$0x1] %v1421
        $region53: #{extinction_scaling_forward.1} parent=39 // loop_footer
          %s370 = sadd.s32 1, %s366
        $region54: #{extinction_scaling_forward.1} parent=39 // loop_footer_branch
          %365 = sbr.rel target = $region50
        $region55: #{extinction_scaling_forward.1} parent=39 // loop_exit
          _
        %v1426 = vld [vmem:[%s278] sm:$0xff]
        %v1427 = vld [vmem:[#allocation3] sm:$0xff]
        %v1428 = vmul.f32 %v1427, 1.442695
        %v1429 = vpow.pop %v1428
        %vm1430 = vcmp.lt.f32.partialorder %v284, 40.0
        %v1431 = vmul.f32 %v1426, %v1429
        %v1432 = vsel %vm1430, %v1431, %v1426
        %v1433 = vld [vmem:[%s282] sm:$0xff]
        %v1434 = vrcp.pop %v1433
        %v1435 = vmul.f32 1.0, %v1434
        %v1436 = vmul.f32 %v1435, %v1435
        %1438 = vset.pattern.permute.xlu0 0
        %1439 = vperm.xlu0 %1438, %v1436
        %v1440 = vpop.permute.xlu0 %1439
        %v1442 = vmul.f32 %v1432, %v1440
        %1443 = vst [vmem:[%s270] sm:$0xff] %v1442
        %s1444 = sand.u32 %s149, 1
        %s1445 = scalar_lea.sflag [#allocation6], %s1444
        %s1446 = sand.u32 %s149, 1
        %s1447 = smul.addr %s1446, 8
        %s1448 = scalar_lea.vmem [#allocation9], %s1447
        // Predicated region
        $region56: #{extinction_scaling_forward.1} parent=39 // pred_check
          %p1449 = pneg %p159
        $region57: #{extinction_scaling_forward.1} parent=39 // pred_check_branch
          %1451 = sbr.rel (%p1449) target = $region59
        $region58: #{extinction_scaling_forward.1} parent=39 // pred_region
          %s1453 = ssub.s32 128, 128
          %1454 = vsyncadd %s1445, %s1453
          %s1455 = smul.addr %s21, 128
          %s1456 = scalar_lea.hbm %s5, %s1455
          %s1458 = sshll.u32 %s1448, 4
          %s1459 = int_to_ptr.vmem [resolvable:$true] %s1458
          %1461 = dma.vmem_to_hbm [thread:$0]  %s1459, 128, %s1456, %s1445
        $region59: #{extinction_scaling_forward.1} parent=39 // pred_fallthru
          _
      $region40: #{extinction_scaling_forward.1} parent=5 // pred_fallthru
        _
      %p1462 = scmp.le.s32.totalorder 2, %s16
      // Predicated region
      $region60: #{extinction_scaling_forward.1} parent=5 // pred_check
        %p1463 = pneg %p1462
      $region61: #{extinction_scaling_forward.1} parent=5 // pred_check_branch
        %1465 = sbr.rel (%p1463) target = $region63
      $region62: #{extinction_scaling_forward.1} parent=5 // pred_region
        %s1466 = ssub.s32 %s16, 2
        // Predicated region
        $region64: #{extinction_scaling_forward.1} parent=62 // pred_check
          %p1467 = pneg %p165
        $region65: #{extinction_scaling_forward.1} parent=62 // pred_check_branch
          %1469 = sbr.rel (%p1467) target = $region67
        $region66: #{extinction_scaling_forward.1} parent=62 // pred_region
          %s1470 = sand.u32 %s150, 1
          %s1471 = scalar_lea.sflag [#allocation6], %s1470
          %s1472 = sand.u32 %s150, 1
          %s1473 = smul.addr %s1472, 8
          %s1474 = scalar_lea.vmem [#allocation9], %s1473
          %1475 = dma.done %s1471, 128
        $region67: #{extinction_scaling_forward.1} parent=62 // pred_fallthru
          _
      $region63: #{extinction_scaling_forward.1} parent=5 // pred_fallthru
        _
    $region6: #{extinction_scaling_forward.1} parent=1 // loop_footer
      %s20 = sadd.s32 1, %s16
    $region7: #{extinction_scaling_forward.1} parent=1 // loop_footer_branch
      %15 = sbr.rel target = $region3
    $region8: #{extinction_scaling_forward.1} parent=1 // loop_exit
      _
    %1476 = vsyncpa [#allocation5], 1
    %s1477 = scalar_lea.sflag [#allocation5], 1
    %1478 = vsyncpa %s1477, 1
    %1479 = vsyncpa [#allocation6], 1
    %s1480 = scalar_lea.sflag [#allocation6], 1
    %1481 = vsyncpa %s1480, 1
    %1482 = vsyncpa [#allocation7], 1
    %s1483 = scalar_lea.sflag [#allocation7], 1
    %1484 = vsyncpa %s1483, 1

</llo_original>
